<compile_context>
chip_gen: v7x
topology: tpu7x:2x2x1
jax: 0.10.0
libtpu: 0.0.40
codegen_flags: <defaults>
</compile_context>

<pallas_src>
import functools

import jax
import jax.numpy as jnp
from jax.experimental import pallas as pl
from jax.experimental.pallas import tpu as pltpu

HIGHEST = jax.lax.Precision.HIGHEST
LN_EPS = 1e-5


def _layer_norm(x, gamma, beta):
    mu = jnp.mean(x, axis=-1, keepdims=True)
    var = jnp.mean((x - mu) ** 2, axis=-1, keepdims=True)
    return (x - mu) * jax.lax.rsqrt(var + LN_EPS) * gamma + beta


def _vmem_limit_bytes(working_set_bytes):
    """Explicit scoped-VMEM budget: working set + headroom, clamped to v7x's
    64 MiB physical VMEM (v5e/v6e have 128 MiB, but one config stays portable)."""
    return int(min(max(int(working_set_bytes * 1.25) + (2 << 20), 8 << 20), 64 << 20))


# -----------------------------------------------------------------------------
# Kernel 1: ln1 -> causal multi-head self-attention -> proj(+bias) -> residual
# -----------------------------------------------------------------------------
def attn_kernel(x_ref, ln_g_ref, ln_b_ref, wq_ref, wkv_ref, wp_ref, bp_ref,
                o_ref, k_ref, v_ref, att_ref, *, n_head):
    qi = pl.program_id(1)
    Tp, E = x_ref.shape                              # leading batch dim squeezed away
    TQ = o_ref.shape[0]
    hs = E // n_head
    scale = float(E) ** -0.5                         # PyTorch Head scales by C**-0.5

    # --- K/V: LayerNorm + fused (E,2E) projection, once per batch row (qi == 0) ---
    @pl.when(qi == 0)
    def _():
        xn = _layer_norm(x_ref[...].astype(jnp.float32), ln_g_ref[...], ln_b_ref[...])
        kv = jnp.dot(xn.astype(jnp.bfloat16), wkv_ref[...],
                     preferred_element_type=jnp.float32)            # (Tp, 2E)
        k_ref[...] = kv[:, :E].astype(jnp.bfloat16)
        v_ref[...] = kv[:, E:].astype(jnp.bfloat16)

    # --- Q for this q-tile ---
    q0 = pl.multiple_of(qi * TQ, TQ)
    xq = x_ref[pl.ds(q0, TQ), :].astype(jnp.float32)                 # (TQ, E)
    xq_n = _layer_norm(xq, ln_g_ref[...], ln_b_ref[...]).astype(jnp.bfloat16)
    q = jnp.dot(xq_n, wq_ref[...], preferred_element_type=jnp.float32)

    # Additive causal mask with global row offset (also masks padded KV columns).
    row = q0 + jax.lax.broadcasted_iota(jnp.int32, (TQ, Tp), 0)
    col = jax.lax.broadcasted_iota(jnp.int32, (TQ, Tp), 1)
    mask_add = jnp.where(row >= col, 0.0, -1e30).astype(jnp.float32)

    # --- per-head attention; heads "concatenated" via the VMEM output slab ---
    for h in range(n_head):                          # static unroll (n_head is small)
        lo, hi = h * hs, (h + 1) * hs
        qh = q[:, lo:hi].astype(jnp.bfloat16)
        s = jax.lax.dot_general(qh, k_ref[:, lo:hi], (((1,), (1,)), ((), ())),
                                preferred_element_type=jnp.float32)  # (TQ, Tp)
        s = s * scale + mask_add
        s = s - jnp.max(s, axis=-1, keepdims=True)
        p = jnp.exp(s)
        p = p * pl.reciprocal(jnp.sum(p, axis=-1, keepdims=True), approx=True)
        # Dropout(wei): identity (eval)
        att_ref[:, lo:hi] = jnp.dot(p.astype(jnp.bfloat16), v_ref[:, lo:hi],
                                    preferred_element_type=jnp.float32
                                    ).astype(jnp.bfloat16)

    # --- single full-contraction output projection + bias + residual ---
    y = jnp.dot(att_ref[...], wp_ref[...], preferred_element_type=jnp.float32)
    y = y + bp_ref[...]                              # Dropout(proj): identity (eval)
    o_ref[...] = (xq + y).astype(o_ref.dtype)


def attention_forward(x, ln_g, ln_b, wq, wk, wv, wp, bp, *, n_head):
    B, T, E = x.shape
    TQ = 128 if T > 128 else T
    Tp = pl.cdiv(T, TQ) * TQ
    xp = x if Tp == T else jnp.pad(x, ((0, 0), (0, Tp - T), (0, 0)))

    wq_bf = wq.astype(jnp.bfloat16)
    wkv_bf = jnp.concatenate([wk, wv], axis=1).astype(jnp.bfloat16)   # fused K|V weight
    wp_bf = wp.astype(jnp.bfloat16)

    # VMEM working set: 2x(Tp,E)f32 x-block + 2x(TQ,E)f32 out-block
    #                  + 2x bf16 weights (Wq + Wkv + Wp = 4*E*E)
    #                  + bf16 K/V scratch (2*Tp*E) + bf16 attention slab (TQ*E).
    est = (2 * Tp * E * 4 + 2 * TQ * E * 4 + 2 * 4 * E * E * 2
           + 2 * Tp * E * 2 + TQ * E * 2)

    const2 = lambda b, q: (0, 0)
    out = pl.pallas_call(
        functools.partial(attn_kernel, n_head=n_head),
        out_shape=jax.ShapeDtypeStruct((B, Tp, E), x.dtype),
        grid=(B, Tp // TQ),
        in_specs=[
            pl.BlockSpec((None, Tp, E), lambda b, q: (b, 0, 0)),  # full row (K/V src)
            pl.BlockSpec((1, E), const2),                         # ln1 gamma
            pl.BlockSpec((1, E), const2),                         # ln1 beta
            pl.BlockSpec((E, E), const2),                         # Wq        (bf16)
            pl.BlockSpec((E, 2 * E), const2),                     # [Wk | Wv] (bf16)
            pl.BlockSpec((E, E), const2),                         # Wproj     (bf16)
            pl.BlockSpec((1, E), const2),                         # bproj
        ],
        out_specs=pl.BlockSpec((None, TQ, E), lambda b, q: (b, q, 0)),
        scratch_shapes=[pltpu.VMEM((Tp, E), jnp.bfloat16),        # K (normed+projected)
                        pltpu.VMEM((Tp, E), jnp.bfloat16),        # V
                        pltpu.VMEM((TQ, E), jnp.bfloat16)],       # per-head output slab
        compiler_params=pltpu.CompilerParams(
            dimension_semantics=("parallel", "arbitrary"),
            vmem_limit_bytes=_vmem_limit_bytes(est)),
    )(xp, ln_g.reshape(1, E), ln_b.reshape(1, E), wq_bf, wkv_bf, wp_bf,
      bp.reshape(1, E))
    return out[:, :T, :] if Tp != T else out


# -----------------------------------------------------------------------------
# Router (NoisyTopkRouter): tiny + data-dependent (top_k / scatter) -> plain JAX.
# -----------------------------------------------------------------------------
def router_gates(x, wr, br, wn, bn, noise, *, top_k, literal_scatter=True):
    """Per-token/per-expert mixture weights; exactly zero for unused experts.

    literal_scatter=True reproduces the reference SparseMoE exactly: its
    `final_output.masked_scatter_` OVERWRITES (it does not accumulate), so only
    the highest-indexed selected expert's weighted output survives the expert
    loop.  Set False for the usual "sum over selected experts" MoE (which is
    what SparseMoEWithCapacity's index_add_ computes).
    """
    ne = wr.shape[-1]
    logits = jnp.dot(x, wr, precision=HIGHEST) + br
    noise_logits = jnp.dot(x, wn, precision=HIGHEST) + bn
    noisy = logits + noise * jax.nn.softplus(noise_logits)
    top_vals, top_idx = jax.lax.top_k(noisy, top_k)
    gk = jax.nn.softmax(top_vals, axis=-1)           # softmax over kept logits only
    onehot = jax.nn.one_hot(top_idx, ne, dtype=x.dtype)
    gates = jnp.einsum('...k,...ke->...e', gk, onehot)
    if literal_scatter:
        last = jnp.max(top_idx, axis=-1)             # highest-indexed selected expert
        gates = gates * jax.nn.one_hot(last, ne, dtype=gates.dtype)
    return gates


# -----------------------------------------------------------------------------
# Kernel 2: ln2 -> gate-weighted Expert MLPs (experts streamed) -> residual
# -----------------------------------------------------------------------------
def moe_kernel(x_ref, g_ref, ln_g_ref, ln_b_ref, w1_ref, b1_ref, w2_ref, b2_ref,
               o_ref, xn_ref, acc_ref):
    e = pl.program_id(1)

    @pl.when(e == 0)
    def _():                                         # ln2 once per token tile
        xin = x_ref[...].astype(jnp.float32)
        xn_ref[...] = _layer_norm(xin, ln_g_ref[...], ln_b_ref[...]).astype(jnp.bfloat16)
        acc_ref[...] = jnp.zeros_like(acc_ref)

    # Expert e (weights streamed in by the grid): Linear -> ReLU -> Linear.
    h = jnp.dot(xn_ref[...], w1_ref[...], preferred_element_type=jnp.float32) + b1_ref[...]
    h = jnp.maximum(h, 0.0)
    y = jnp.dot(h.astype(jnp.bfloat16), w2_ref[...],
                preferred_element_type=jnp.float32) + b2_ref[...]

    # Gate column e (exact zero for tokens not routed to expert e); the gate tile
    # is VMEM-resident across the expert axis, extraction is a select + lane-reduce.
    g = g_ref[...].astype(jnp.float32)                               # (TM, NE)
    sel = jax.lax.broadcasted_iota(jnp.int32, g.shape, 1) == e
    gcol = jnp.sum(jnp.where(sel, g, 0.0), axis=1, keepdims=True)    # (TM, 1)
    acc_ref[...] += gcol * y                         # Expert Dropout: identity (eval)

    @pl.when(e == pl.num_programs(1) - 1)
    def _():
        o_ref[...] = (x_ref[...].astype(jnp.float32) + acc_ref[...]).astype(o_ref.dtype)


def moe_forward(x, gates, ln_g, ln_b, w1, b1, w2, b2):
    B, T, E = x.shape
    NE, _, H = w1.shape
    M = B * T
    if M >= 512:
        TM = 256
    elif M >= 128:
        TM = 128
    else:
        TM = M                                       # toy sizes: single full-row tile
    Mp = pl.cdiv(M, TM) * TM
    x2 = x.reshape(M, E)
    g2 = gates.reshape(M, NE)
    if Mp != M:                                      # zero-pad rows (gates=0 -> no-op)
        x2 = jnp.pad(x2, ((0, Mp - M), (0, 0)))
        g2 = jnp.pad(g2, ((0, Mp - M), (0, 0)))

    # VMEM working set: 2x token/gate/out tiles + 2x double-buffered per-expert bf16
    # weight blocks (W1[e], W2[e]) + biases + scratch (xn bf16, acc f32).
    # Independent of num_experts, so it scales to production NE on v7x (64 MiB).
    est = (2 * TM * (E + NE) * 4 + 2 * TM * E * 4
           + 2 * 2 * E * H * 2 + 2 * (H + E) * 4 + TM * E * (2 + 4))

    row = lambda i, e: (i, 0)
    const2 = lambda i, e: (0, 0)
    expert3 = lambda i, e: (e, 0, 0)
    out = pl.pallas_call(
        moe_kernel,
        out_shape=jax.ShapeDtypeStruct((Mp, E), x.dtype),
        grid=(Mp // TM, NE),
        in_specs=[
            pl.BlockSpec((TM, E), row),              # token tile  (resident across e)
            pl.BlockSpec((TM, NE), row),             # gate tile   (resident across e)
            pl.BlockSpec((1, E), const2),            # ln2 gamma
            pl.BlockSpec((1, E), const2),            # ln2 beta
            pl.BlockSpec((None, E, H), expert3),     # W1[e] (bf16, streamed)
            pl.BlockSpec((None, 1, H), expert3),     # b1[e]
            pl.BlockSpec((None, H, E), expert3),     # W2[e] (bf16, streamed)
            pl.BlockSpec((None, 1, E), expert3),     # b2[e]
        ],
        out_specs=pl.BlockSpec((TM, E), row),
        scratch_shapes=[pltpu.VMEM((TM, E), jnp.bfloat16),   # ln2(x) tile
                        pltpu.VMEM((TM, E), jnp.float32)],   # mixture accumulator
        compiler_params=pltpu.CompilerParams(
            dimension_semantics=("parallel", "arbitrary"),
            vmem_limit_bytes=_vmem_limit_bytes(est)),
    )(x2, g2, ln_g.reshape(1, E), ln_b.reshape(1, E),
      w1.astype(jnp.bfloat16), b1, w2.astype(jnp.bfloat16), b2)
    return out[:M].reshape(B, T, E)


# -----------------------------------------------------------------------------
# Full Block forward (Pallas path) and pure-JAX references
# -----------------------------------------------------------------------------
def block_forward(x, p, noise, *, n_head, top_k):
    x1 = attention_forward(x, p['ln1_g'], p['ln1_b'], p['wq'], p['wk'], p['wv'],
                           p['wp'], p['bp'], n_head=n_head)
    gates = router_gates(x1, p['wr'], p['br'], p['wn'], p['bn'], noise, top_k=top_k)
    return moe_forward(x1, gates, p['ln2_g'], p['ln2_b'],
                       p['w1'], p['b1'], p['w2'], p['b2'])


def attention_reference(x, p, *, n_head):
    B, T, E = x.shape
    hs = E // n_head
    xn = _layer_norm(x, p['ln1_g'], p['ln1_b'])
    q = jnp.dot(xn, p['wq'], precision=HIGHEST)
    k = jnp.dot(xn, p['wk'], precision=HIGHEST)
    v = jnp.dot(xn, p['wv'], precision=HIGHEST)
    mask = jnp.tril(jnp.ones((T, T), bool))
    heads = []
    for h in range(n_head):
        sl = slice(h * hs, (h + 1) * hs)
        s = jnp.einsum('btd,bsd->bts', q[..., sl], k[..., sl],
                       precision=HIGHEST) * (float(E) ** -0.5)
        s = jnp.where(mask, s, -jnp.inf)
        w = jax.nn.softmax(s, axis=-1)
        heads.append(jnp.einsum('bts,bsd->btd', w, v[..., sl], precision=HIGHEST))
    att = jnp.concatenate(heads, axis=-1)
    return x + jnp.dot(att, p['wp'], precision=HIGHEST) + p['bp']


def moe_reference(x1, gates, p):
    xn = _layer_norm(x1, p['ln2_g'], p['ln2_b'])
    acc = jnp.zeros_like(x1)
    for e in range(p['w1'].shape[0]):
        h = jax.nn.relu(jnp.dot(xn, p['w1'][e], precision=HIGHEST) + p['b1'][e])
        y = jnp.dot(h, p['w2'][e], precision=HIGHEST) + p['b2'][e]
        acc = acc + gates[..., e:e + 1] * y
    return x1 + acc


def init_params(key, n_embed, n_head, num_experts, dtype=jnp.float32):
    """nn.Linear-style init (uniform +/- 1/sqrt(fan_in)); weights in (in, out)."""
    H = 4 * n_embed
    ks = jax.random.split(key, 13)
    le = 1.0 / n_embed ** 0.5
    lh = 1.0 / H ** 0.5
    u = lambda k, s, lim: jax.random.uniform(k, s, dtype, -lim, lim)
    return dict(
        ln1_g=jnp.ones((n_embed,), dtype), ln1_b=jnp.zeros((n_embed,), dtype),
        ln2_g=jnp.ones((n_embed,), dtype), ln2_b=jnp.zeros((n_embed,), dtype),
        wq=u(ks[0], (n_embed, n_embed), le),   # per-head q/k/v weights stacked on cols
        wk=u(ks[1], (n_embed, n_embed), le),
        wv=u(ks[2], (n_embed, n_embed), le),
        wp=u(ks[3], (n_embed, n_embed), le), bp=u(ks[4], (n_embed,), le),
        wr=u(ks[5], (n_embed, num_experts), le), br=u(ks[6], (num_experts,), le),
        wn=u(ks[7], (n_embed, num_experts), le), bn=u(ks[8], (num_experts,), le),
        w1=u(ks[9], (num_experts, n_embed, H), le),
        b1=u(ks[10], (num_experts, 1, H), le),
        w2=u(ks[11], (num_experts, H, n_embed), lh),
        b2=u(ks[12], (num_experts, 1, n_embed), lh),
    )


if __name__ == "__main__":
    key = jax.random.PRNGKey(0)
    kx, kp, kn = jax.random.split(key, 3)

    batch, seq, n_embed, n_head = 2, 8, 32, 4       # block_size == seq
    num_experts, top_k = 4, 2

    x = jax.random.normal(kx, (batch, seq, n_embed), jnp.float32)
    params = init_params(kp, n_embed, n_head, num_experts)
    # torch.randn_like(...) noise for the noisy router, generated host-side so the
    # Pallas path and the references see identical noise.
    noise = jax.random.normal(kn, (batch, seq, num_experts), jnp.float32)

    fwd = jax.jit(functools.partial(block_forward, n_head=n_head, top_k=top_k))
    y = jax.block_until_ready(fwd(x, params, noise))
    assert y.shape == (batch, seq, n_embed)
    assert bool(jnp.all(jnp.isfinite(y)))

    # Per-kernel verification against pure-JAX references on identical inputs.
    # (The hard top-k router makes the end-to-end map discontinuous: a bf16-level
    #  difference in x1 could flip an expert choice and change the output by O(1),
    #  so each kernel is validated separately with shared routing.)
    attn_fn = jax.jit(functools.partial(attention_forward, n_head=n_head))
    x1 = attn_fn(x, params['ln1_g'], params['ln1_b'], params['wq'], params['wk'],
                 params['wv'], params['wp'], params['bp'])
    x1_ref = attention_reference(x, params, n_head=n_head)
    err_a = float(jnp.max(jnp.abs(x1 - x1_ref)))
    assert jnp.allclose(x1, x1_ref, atol=3e-2, rtol=3e-2), f"attn max err {err_a}"

    gates = router_gates(x1, params['wr'], params['br'], params['wn'], params['bn'],
                         noise, top_k=top_k)
    y2 = jax.jit(moe_forward)(x1, gates, params['ln2_g'], params['ln2_b'],
                              params['w1'], params['b1'], params['w2'], params['b2'])
    y2_ref = moe_reference(x1, gates, params)
    err_m = float(jnp.max(jnp.abs(y2 - y2_ref)))
    assert jnp.allclose(y2, y2_ref, atol=3e-2, rtol=3e-2), f"moe max err {err_m}"

    print("KERNEL_OK")
</pallas_src>

<mosaic_0001>
module attributes {stable_mosaic.version = 11 : i64} {
  func.func @attn_kernel(%arg0: i32, %arg1: i32, %arg2: memref<1x8x32xf32, #tpu.memory_space<vmem>>, %arg3: memref<1x32xf32, #tpu.memory_space<vmem>>, %arg4: memref<1x32xf32, #tpu.memory_space<vmem>>, %arg5: memref<32x32xbf16, #tpu.memory_space<vmem>>, %arg6: memref<32x64xbf16, #tpu.memory_space<vmem>>, %arg7: memref<32x32xbf16, #tpu.memory_space<vmem>>, %arg8: memref<1x32xf32, #tpu.memory_space<vmem>>, %arg9: memref<1x8x32xf32, #tpu.memory_space<vmem>>, %arg10: memref<8x32xbf16, #tpu.memory_space<vmem>>, %arg11: memref<8x32xbf16, #tpu.memory_space<vmem>>, %arg12: memref<8x32xbf16, #tpu.memory_space<vmem>>) attributes {dimension_semantics = [#tpu.dimension_semantics<parallel>, #tpu.dimension_semantics<arbitrary>], iteration_bounds = array<i64: 2, 1>, scalar_prefetch = 0 : i64, scratch_operands = 3 : i64, tpu.core_type = #tpu.core_type<tc>, window_params = [{transform_indices = @transform_0, window_bounds = array<i64: 1, 8, 32>}, {pipeline_mode = #tpu.pipeline_mode<synchronous>, transform_indices = @transform_1, window_bounds = array<i64: 1, 32>}, {pipeline_mode = #tpu.pipeline_mode<synchronous>, transform_indices = @transform_2, window_bounds = array<i64: 1, 32>}, {pipeline_mode = #tpu.pipeline_mode<synchronous>, transform_indices = @transform_3, window_bounds = array<i64: 32, 32>}, {pipeline_mode = #tpu.pipeline_mode<synchronous>, transform_indices = @transform_4, window_bounds = array<i64: 32, 64>}, {pipeline_mode = #tpu.pipeline_mode<synchronous>, transform_indices = @transform_5, window_bounds = array<i64: 32, 32>}, {pipeline_mode = #tpu.pipeline_mode<synchronous>, transform_indices = @transform_6, window_bounds = array<i64: 1, 32>}, {transform_indices = @transform_7, window_bounds = array<i64: 1, 8, 32>}]} {
    %c0_i32 = arith.constant 0 : i32
    %0 = arith.cmpi eq, %arg1, %c0_i32 : i32
    %1 = arith.extui %0 : i1 to i32
    %c0_i32_0 = arith.constant 0 : i32
    %2 = arith.cmpi ne, %1, %c0_i32_0 : i32
    scf.if %2 {
      %c0_66 = arith.constant 0 : index
      %c0_67 = arith.constant 0 : index
      %c0_68 = arith.constant 0 : index
      %141 = vector.load %arg2[%c0_66, %c0_67, %c0_68] : memref<1x8x32xf32, #tpu.memory_space<vmem>>, vector<1x8x32xf32>
      %142 = vector.shape_cast %141 : vector<1x8x32xf32> to vector<8x32xf32>
      %c0_69 = arith.constant 0 : index
      %c0_70 = arith.constant 0 : index
      %143 = vector.load %arg3[%c0_69, %c0_70] : memref<1x32xf32, #tpu.memory_space<vmem>>, vector<1x32xf32>
      %c0_71 = arith.constant 0 : index
      %c0_72 = arith.constant 0 : index
      %144 = vector.load %arg4[%c0_71, %c0_72] : memref<1x32xf32, #tpu.memory_space<vmem>>, vector<1x32xf32>
      %cst_73 = arith.constant dense<0.000000e+00> : vector<8xf32>
      %145 = vector.multi_reduction <add>, %142, %cst_73 [1] : vector<8x32xf32> to vector<8xf32>
      %146 = vector.shape_cast %145 : vector<8xf32> to vector<8x1xf32>
      %cst_74 = arith.constant 3.200000e+01 : f32
      %147 = vector.broadcast %cst_74 : f32 to vector<8x1xf32>
      %148 = arith.divf %146, %147 : vector<8x1xf32>
      %149 = vector.broadcast %148 : vector<8x1xf32> to vector<8x32xf32>
      %150 = arith.subf %142, %149 : vector<8x32xf32>
      %151 = arith.mulf %150, %150 : vector<8x32xf32>
      %cst_75 = arith.constant dense<0.000000e+00> : vector<8xf32>
      %152 = vector.multi_reduction <add>, %151, %cst_75 [1] : vector<8x32xf32> to vector<8xf32>
      %153 = vector.shape_cast %152 : vector<8xf32> to vector<8x1xf32>
      %cst_76 = arith.constant 3.200000e+01 : f32
      %154 = vector.broadcast %cst_76 : f32 to vector<8x1xf32>
      %155 = arith.divf %153, %154 : vector<8x1xf32>
      %156 = vector.broadcast %148 : vector<8x1xf32> to vector<8x32xf32>
      %157 = arith.subf %142, %156 : vector<8x32xf32>
      %cst_77 = arith.constant 9.99999974E-6 : f32
      %158 = vector.broadcast %cst_77 : f32 to vector<8x1xf32>
      %159 = arith.addf %155, %158 : vector<8x1xf32>
      %160 = math.rsqrt %159 : vector<8x1xf32>
      %161 = vector.broadcast %160 : vector<8x1xf32> to vector<8x32xf32>
      %162 = arith.mulf %157, %161 : vector<8x32xf32>
      %163 = vector.broadcast %143 : vector<1x32xf32> to vector<8x32xf32>
      %164 = arith.mulf %162, %163 : vector<8x32xf32>
      %165 = vector.broadcast %144 : vector<1x32xf32> to vector<8x32xf32>
      %166 = arith.addf %164, %165 : vector<8x32xf32>
      %167 = arith.truncf %166 : vector<8x32xf32> to vector<8x32xbf16>
      %c0_78 = arith.constant 0 : index
      %c0_79 = arith.constant 0 : index
      %168 = vector.load %arg6[%c0_78, %c0_79] : memref<32x64xbf16, #tpu.memory_space<vmem>>, vector<32x64xbf16>
      %cst_80 = arith.constant dense<0.000000e+00> : vector<8x64xf32>
      %169 = tpu.matmul %167, %168, %cst_80 {dimension_numbers = #tpu.dot_dimension_numbers<[1], [0], [0], [1], [0, 0, 1, 1], [], []>} : vector<8x32xbf16>, vector<32x64xbf16>, vector<8x64xf32> -> vector<8x64xf32>
      %170 = vector.extract_strided_slice %169 {offsets = [0, 0], sizes = [8, 32], strides = [1, 1]} : vector<8x64xf32> to vector<8x32xf32>
      %171 = arith.truncf %170 : vector<8x32xf32> to vector<8x32xbf16>
      %c0_81 = arith.constant 0 : index
      %c0_82 = arith.constant 0 : index
      %172 = vector.load %arg10[%c0_81, %c0_82] : memref<8x32xbf16, #tpu.memory_space<vmem>>, vector<8x32xbf16>
      tpu.vector_store %arg10[%c0_81, %c0_82], %171 {strides = array<i32>} : memref<8x32xbf16, #tpu.memory_space<vmem>>, vector<8x32xbf16>,
      %173 = vector.extract_strided_slice %169 {offsets = [0, 32], sizes = [8, 32], strides = [1, 1]} : vector<8x64xf32> to vector<8x32xf32>
      %174 = arith.truncf %173 : vector<8x32xf32> to vector<8x32xbf16>
      %c0_83 = arith.constant 0 : index
      %c0_84 = arith.constant 0 : index
      %175 = vector.load %arg11[%c0_83, %c0_84] : memref<8x32xbf16, #tpu.memory_space<vmem>>, vector<8x32xbf16>
      tpu.vector_store %arg11[%c0_83, %c0_84], %174 {strides = array<i32>} : memref<8x32xbf16, #tpu.memory_space<vmem>>, vector<8x32xbf16>,
    } else {
    }
    %c8_i32 = arith.constant 8 : i32
    %3 = arith.muli %arg1, %c8_i32 : i32
    %4 = tpu.assume_multiple %3, 8 : i32
    %c0 = arith.constant 0 : index
    %5 = arith.index_cast %4 : i32 to index
    %c0_1 = arith.constant 0 : index
    %6 = vector.load %arg2[%c0, %5, %c0_1] : memref<1x8x32xf32, #tpu.memory_space<vmem>>, vector<1x8x32xf32>
    %7 = vector.shape_cast %6 : vector<1x8x32xf32> to vector<8x32xf32>
    %c0_2 = arith.constant 0 : index
    %c0_3 = arith.constant 0 : index
    %8 = vector.load %arg3[%c0_2, %c0_3] : memref<1x32xf32, #tpu.memory_space<vmem>>, vector<1x32xf32>
    %c0_4 = arith.constant 0 : index
    %c0_5 = arith.constant 0 : index
    %9 = vector.load %arg4[%c0_4, %c0_5] : memref<1x32xf32, #tpu.memory_space<vmem>>, vector<1x32xf32>
    %cst = arith.constant dense<0.000000e+00> : vector<8xf32>
    %10 = vector.multi_reduction <add>, %7, %cst [1] : vector<8x32xf32> to vector<8xf32>
    %11 = vector.shape_cast %10 : vector<8xf32> to vector<8x1xf32>
    %cst_6 = arith.constant 3.200000e+01 : f32
    %12 = vector.broadcast %cst_6 : f32 to vector<8x1xf32>
    %13 = arith.divf %11, %12 : vector<8x1xf32>
    %14 = vector.broadcast %13 : vector<8x1xf32> to vector<8x32xf32>
    %15 = arith.subf %7, %14 : vector<8x32xf32>
    %16 = arith.mulf %15, %15 : vector<8x32xf32>
    %cst_7 = arith.constant dense<0.000000e+00> : vector<8xf32>
    %17 = vector.multi_reduction <add>, %16, %cst_7 [1] : vector<8x32xf32> to vector<8xf32>
    %18 = vector.shape_cast %17 : vector<8xf32> to vector<8x1xf32>
    %cst_8 = arith.constant 3.200000e+01 : f32
    %19 = vector.broadcast %cst_8 : f32 to vector<8x1xf32>
    %20 = arith.divf %18, %19 : vector<8x1xf32>
    %21 = vector.broadcast %13 : vector<8x1xf32> to vector<8x32xf32>
    %22 = arith.subf %7, %21 : vector<8x32xf32>
    %cst_9 = arith.constant 9.99999974E-6 : f32
    %23 = vector.broadcast %cst_9 : f32 to vector<8x1xf32>
    %24 = arith.addf %20, %23 : vector<8x1xf32>
    %25 = math.rsqrt %24 : vector<8x1xf32>
    %26 = vector.broadcast %25 : vector<8x1xf32> to vector<8x32xf32>
    %27 = arith.mulf %22, %26 : vector<8x32xf32>
    %28 = vector.broadcast %8 : vector<1x32xf32> to vector<8x32xf32>
    %29 = arith.mulf %27, %28 : vector<8x32xf32>
    %30 = vector.broadcast %9 : vector<1x32xf32> to vector<8x32xf32>
    %31 = arith.addf %29, %30 : vector<8x32xf32>
    %32 = arith.truncf %31 : vector<8x32xf32> to vector<8x32xbf16>
    %c0_10 = arith.constant 0 : index
    %c0_11 = arith.constant 0 : index
    %33 = vector.load %arg5[%c0_10, %c0_11] : memref<32x32xbf16, #tpu.memory_space<vmem>>, vector<32x32xbf16>
    %cst_12 = arith.constant dense<0.000000e+00> : vector<8x32xf32>
    %34 = tpu.matmul %32, %33, %cst_12 {dimension_numbers = #tpu.dot_dimension_numbers<[1], [0], [0], [1], [0, 0, 1, 1], [], []>} : vector<8x32xbf16>, vector<32x32xbf16>, vector<8x32xf32> -> vector<8x32xf32>
    %35 = tpu.iota {dimensions = array<i32: 0>} : vector<8x8xi32>
    %36 = vector.broadcast %4 : i32 to vector<8x8xi32>
    %37 = arith.addi %36, %35 : vector<8x8xi32>
    %38 = tpu.iota {dimensions = array<i32: 1>} : vector<8x8xi32>
    %39 = arith.cmpi sge, %37, %38 : vector<8x8xi32>
    %cst_13 = arith.constant 0.000000e+00 : f32
    %cst_14 = arith.constant -1.000000e+30 : f32
    %40 = vector.broadcast %cst_13 : f32 to vector<8x8xf32>
    %41 = vector.broadcast %cst_14 : f32 to vector<8x8xf32>
    %42 = arith.select %39, %40, %41 : vector<8x8xi1>, vector<8x8xf32>
    %43 = vector.extract_strided_slice %34 {offsets = [0, 0], sizes = [8, 8], strides = [1, 1]} : vector<8x32xf32> to vector<8x8xf32>
    %44 = arith.truncf %43 : vector<8x8xf32> to vector<8x8xbf16>
    %c0_15 = arith.constant 0 : index
    %c0_16 = arith.constant 0 : index
    %45 = vector.load %arg10[%c0_15, %c0_16] : memref<8x32xbf16, #tpu.memory_space<vmem>>, vector<8x8xbf16>
    %cst_17 = arith.constant dense<0.000000e+00> : vector<8x8xf32>
    %46 = tpu.matmul %44, %45, %cst_17 {dimension_numbers = #tpu.dot_dimension_numbers<[1], [1], [0], [0], [0, 0, 1, 0], [], []>} : vector<8x8xbf16>, vector<8x8xbf16>, vector<8x8xf32> -> vector<8x8xf32>
    %cst_18 = arith.constant 0.176776692 : f32
    %47 = vector.broadcast %cst_18 : f32 to vector<8x8xf32>
    %48 = arith.mulf %46, %47 : vector<8x8xf32>
    %49 = arith.addf %48, %42 : vector<8x8xf32>
    %cst_19 = arith.constant dense<0xFF800000> : vector<8xf32>
    %50 = vector.multi_reduction <maximumf>, %49, %cst_19 [1] : vector<8x8xf32> to vector<8xf32>
    %51 = vector.shape_cast %50 : vector<8xf32> to vector<8x1xf32>
    %52 = vector.broadcast %51 : vector<8x1xf32> to vector<8x8xf32>
    %53 = arith.subf %49, %52 : vector<8x8xf32>
    %54 = math.exp %53 : vector<8x8xf32>
    %cst_20 = arith.constant dense<0.000000e+00> : vector<8xf32>
    %55 = vector.multi_reduction <add>, %54, %cst_20 [1] : vector<8x8xf32> to vector<8xf32>
    %56 = vector.shape_cast %55 : vector<8xf32> to vector<8x1xf32>
    %57 = tpu.reciprocal %56 {approx = true} : vector<8x1xf32> -> vector<8x1xf32>
    %58 = vector.broadcast %57 : vector<8x1xf32> to vector<8x8xf32>
    %59 = arith.mulf %54, %58 : vector<8x8xf32>
    %60 = arith.truncf %59 : vector<8x8xf32> to vector<8x8xbf16>
    %c0_21 = arith.constant 0 : index
    %c0_22 = arith.constant 0 : index
    %61 = vector.load %arg11[%c0_21, %c0_22] : memref<8x32xbf16, #tpu.memory_space<vmem>>, vector<8x8xbf16>
    %cst_23 = arith.constant dense<0.000000e+00> : vector<8x8xf32>
    %62 = tpu.matmul %60, %61, %cst_23 {dimension_numbers = #tpu.dot_dimension_numbers<[1], [0], [0], [1], [0, 0, 1, 1], [], []>} : vector<8x8xbf16>, vector<8x8xbf16>, vector<8x8xf32> -> vector<8x8xf32>
    %63 = arith.truncf %62 : vector<8x8xf32> to vector<8x8xbf16>
    %c0_24 = arith.constant 0 : index
    %c0_25 = arith.constant 0 : index
    %64 = vector.load %arg12[%c0_24, %c0_25] : memref<8x32xbf16, #tpu.memory_space<vmem>>, vector<8x8xbf16>
    tpu.vector_store %arg12[%c0_24, %c0_25], %63 {strides = array<i32>} : memref<8x32xbf16, #tpu.memory_space<vmem>>, vector<8x8xbf16>,
    %65 = vector.extract_strided_slice %34 {offsets = [0, 8], sizes = [8, 8], strides = [1, 1]} : vector<8x32xf32> to vector<8x8xf32>
    %66 = arith.truncf %65 : vector<8x8xf32> to vector<8x8xbf16>
    %c0_26 = arith.constant 0 : index
    %c8 = arith.constant 8 : index
    %67 = vector.load %arg10[%c0_26, %c8] : memref<8x32xbf16, #tpu.memory_space<vmem>>, vector<8x8xbf16>
    %cst_27 = arith.constant dense<0.000000e+00> : vector<8x8xf32>
    %68 = tpu.matmul %66, %67, %cst_27 {dimension_numbers = #tpu.dot_dimension_numbers<[1], [1], [0], [0], [0, 0, 1, 0], [], []>} : vector<8x8xbf16>, vector<8x8xbf16>, vector<8x8xf32> -> vector<8x8xf32>
    %cst_28 = arith.constant 0.176776692 : f32
    %69 = vector.broadcast %cst_28 : f32 to vector<8x8xf32>
    %70 = arith.mulf %68, %69 : vector<8x8xf32>
    %71 = arith.addf %70, %42 : vector<8x8xf32>
    %cst_29 = arith.constant dense<0xFF800000> : vector<8xf32>
    %72 = vector.multi_reduction <maximumf>, %71, %cst_29 [1] : vector<8x8xf32> to vector<8xf32>
    %73 = vector.shape_cast %72 : vector<8xf32> to vector<8x1xf32>
    %74 = vector.broadcast %73 : vector<8x1xf32> to vector<8x8xf32>
    %75 = arith.subf %71, %74 : vector<8x8xf32>
    %76 = math.exp %75 : vector<8x8xf32>
    %cst_30 = arith.constant dense<0.000000e+00> : vector<8xf32>
    %77 = vector.multi_reduction <add>, %76, %cst_30 [1] : vector<8x8xf32> to vector<8xf32>
    %78 = vector.shape_cast %77 : vector<8xf32> to vector<8x1xf32>
    %79 = tpu.reciprocal %78 {approx = true} : vector<8x1xf32> -> vector<8x1xf32>
    %80 = vector.broadcast %79 : vector<8x1xf32> to vector<8x8xf32>
    %81 = arith.mulf %76, %80 : vector<8x8xf32>
    %82 = arith.truncf %81 : vector<8x8xf32> to vector<8x8xbf16>
    %c0_31 = arith.constant 0 : index
    %c8_32 = arith.constant 8 : index
    %83 = vector.load %arg11[%c0_31, %c8_32] : memref<8x32xbf16, #tpu.memory_space<vmem>>, vector<8x8xbf16>
    %cst_33 = arith.constant dense<0.000000e+00> : vector<8x8xf32>
    %84 = tpu.matmul %82, %83, %cst_33 {dimension_numbers = #tpu.dot_dimension_numbers<[1], [0], [0], [1], [0, 0, 1, 1], [], []>} : vector<8x8xbf16>, vector<8x8xbf16>, vector<8x8xf32> -> vector<8x8xf32>
    %85 = arith.truncf %84 : vector<8x8xf32> to vector<8x8xbf16>
    %c0_34 = arith.constant 0 : index
    %c8_35 = arith.constant 8 : index
    %86 = vector.load %arg12[%c0_34, %c8_35] : memref<8x32xbf16, #tpu.memory_space<vmem>>, vector<8x8xbf16>
    tpu.vector_store %arg12[%c0_34, %c8_35], %85 {strides = array<i32>} : memref<8x32xbf16, #tpu.memory_space<vmem>>, vector<8x8xbf16>,
    %87 = vector.extract_strided_slice %34 {offsets = [0, 16], sizes = [8, 8], strides = [1, 1]} : vector<8x32xf32> to vector<8x8xf32>
    %88 = arith.truncf %87 : vector<8x8xf32> to vector<8x8xbf16>
    %c0_36 = arith.constant 0 : index
    %c16 = arith.constant 16 : index
    %89 = vector.load %arg10[%c0_36, %c16] : memref<8x32xbf16, #tpu.memory_space<vmem>>, vector<8x8xbf16>
    %cst_37 = arith.constant dense<0.000000e+00> : vector<8x8xf32>
    %90 = tpu.matmul %88, %89, %cst_37 {dimension_numbers = #tpu.dot_dimension_numbers<[1], [1], [0], [0], [0, 0, 1, 0], [], []>} : vector<8x8xbf16>, vector<8x8xbf16>, vector<8x8xf32> -> vector<8x8xf32>
    %cst_38 = arith.constant 0.176776692 : f32
    %91 = vector.broadcast %cst_38 : f32 to vector<8x8xf32>
    %92 = arith.mulf %90, %91 : vector<8x8xf32>
    %93 = arith.addf %92, %42 : vector<8x8xf32>
    %cst_39 = arith.constant dense<0xFF800000> : vector<8xf32>
    %94 = vector.multi_reduction <maximumf>, %93, %cst_39 [1] : vector<8x8xf32> to vector<8xf32>
    %95 = vector.shape_cast %94 : vector<8xf32> to vector<8x1xf32>
    %96 = vector.broadcast %95 : vector<8x1xf32> to vector<8x8xf32>
    %97 = arith.subf %93, %96 : vector<8x8xf32>
    %98 = math.exp %97 : vector<8x8xf32>
    %cst_40 = arith.constant dense<0.000000e+00> : vector<8xf32>
    %99 = vector.multi_reduction <add>, %98, %cst_40 [1] : vector<8x8xf32> to vector<8xf32>
    %100 = vector.shape_cast %99 : vector<8xf32> to vector<8x1xf32>
    %101 = tpu.reciprocal %100 {approx = true} : vector<8x1xf32> -> vector<8x1xf32>
    %102 = vector.broadcast %101 : vector<8x1xf32> to vector<8x8xf32>
    %103 = arith.mulf %98, %102 : vector<8x8xf32>
    %104 = arith.truncf %103 : vector<8x8xf32> to vector<8x8xbf16>
    %c0_41 = arith.constant 0 : index
    %c16_42 = arith.constant 16 : index
    %105 = vector.load %arg11[%c0_41, %c16_42] : memref<8x32xbf16, #tpu.memory_space<vmem>>, vector<8x8xbf16>
    %cst_43 = arith.constant dense<0.000000e+00> : vector<8x8xf32>
    %106 = tpu.matmul %104, %105, %cst_43 {dimension_numbers = #tpu.dot_dimension_numbers<[1], [0], [0], [1], [0, 0, 1, 1], [], []>} : vector<8x8xbf16>, vector<8x8xbf16>, vector<8x8xf32> -> vector<8x8xf32>
    %107 = arith.truncf %106 : vector<8x8xf32> to vector<8x8xbf16>
    %c0_44 = arith.constant 0 : index
    %c16_45 = arith.constant 16 : index
    %108 = vector.load %arg12[%c0_44, %c16_45] : memref<8x32xbf16, #tpu.memory_space<vmem>>, vector<8x8xbf16>
    tpu.vector_store %arg12[%c0_44, %c16_45], %107 {strides = array<i32>} : memref<8x32xbf16, #tpu.memory_space<vmem>>, vector<8x8xbf16>,
    %109 = vector.extract_strided_slice %34 {offsets = [0, 24], sizes = [8, 8], strides = [1, 1]} : vector<8x32xf32> to vector<8x8xf32>
    %110 = arith.truncf %109 : vector<8x8xf32> to vector<8x8xbf16>
    %c0_46 = arith.constant 0 : index
    %c24 = arith.constant 24 : index
    %111 = vector.load %arg10[%c0_46, %c24] : memref<8x32xbf16, #tpu.memory_space<vmem>>, vector<8x8xbf16>
    %cst_47 = arith.constant dense<0.000000e+00> : vector<8x8xf32>
    %112 = tpu.matmul %110, %111, %cst_47 {dimension_numbers = #tpu.dot_dimension_numbers<[1], [1], [0], [0], [0, 0, 1, 0], [], []>} : vector<8x8xbf16>, vector<8x8xbf16>, vector<8x8xf32> -> vector<8x8xf32>
    %cst_48 = arith.constant 0.176776692 : f32
    %113 = vector.broadcast %cst_48 : f32 to vector<8x8xf32>
    %114 = arith.mulf %112, %113 : vector<8x8xf32>
    %115 = arith.addf %114, %42 : vector<8x8xf32>
    %cst_49 = arith.constant dense<0xFF800000> : vector<8xf32>
    %116 = vector.multi_reduction <maximumf>, %115, %cst_49 [1] : vector<8x8xf32> to vector<8xf32>
    %117 = vector.shape_cast %116 : vector<8xf32> to vector<8x1xf32>
    %118 = vector.broadcast %117 : vector<8x1xf32> to vector<8x8xf32>
    %119 = arith.subf %115, %118 : vector<8x8xf32>
    %120 = math.exp %119 : vector<8x8xf32>
    %cst_50 = arith.constant dense<0.000000e+00> : vector<8xf32>
    %121 = vector.multi_reduction <add>, %120, %cst_50 [1] : vector<8x8xf32> to vector<8xf32>
    %122 = vector.shape_cast %121 : vector<8xf32> to vector<8x1xf32>
    %123 = tpu.reciprocal %122 {approx = true} : vector<8x1xf32> -> vector<8x1xf32>
    %124 = vector.broadcast %123 : vector<8x1xf32> to vector<8x8xf32>
    %125 = arith.mulf %120, %124 : vector<8x8xf32>
    %126 = arith.truncf %125 : vector<8x8xf32> to vector<8x8xbf16>
    %c0_51 = arith.constant 0 : index
    %c24_52 = arith.constant 24 : index
    %127 = vector.load %arg11[%c0_51, %c24_52] : memref<8x32xbf16, #tpu.memory_space<vmem>>, vector<8x8xbf16>
    %cst_53 = arith.constant dense<0.000000e+00> : vector<8x8xf32>
    %128 = tpu.matmul %126, %127, %cst_53 {dimension_numbers = #tpu.dot_dimension_numbers<[1], [0], [0], [1], [0, 0, 1, 1], [], []>} : vector<8x8xbf16>, vector<8x8xbf16>, vector<8x8xf32> -> vector<8x8xf32>
    %129 = arith.truncf %128 : vector<8x8xf32> to vector<8x8xbf16>
    %c0_54 = arith.constant 0 : index
    %c24_55 = arith.constant 24 : index
    %130 = vector.load %arg12[%c0_54, %c24_55] : memref<8x32xbf16, #tpu.memory_space<vmem>>, vector<8x8xbf16>
    tpu.vector_store %arg12[%c0_54, %c24_55], %129 {strides = array<i32>} : memref<8x32xbf16, #tpu.memory_space<vmem>>, vector<8x8xbf16>,
    %c0_56 = arith.constant 0 : index
    %c0_57 = arith.constant 0 : index
    %131 = vector.load %arg12[%c0_56, %c0_57] : memref<8x32xbf16, #tpu.memory_space<vmem>>, vector<8x32xbf16>
    %c0_58 = arith.constant 0 : index
    %c0_59 = arith.constant 0 : index
    %132 = vector.load %arg7[%c0_58, %c0_59] : memref<32x32xbf16, #tpu.memory_space<vmem>>, vector<32x32xbf16>
    %cst_60 = arith.constant dense<0.000000e+00> : vector<8x32xf32>
    %133 = tpu.matmul %131, %132, %cst_60 {dimension_numbers = #tpu.dot_dimension_numbers<[1], [0], [0], [1], [0, 0, 1, 1], [], []>} : vector<8x32xbf16>, vector<32x32xbf16>, vector<8x32xf32> -> vector<8x32xf32>
    %c0_61 = arith.constant 0 : index
    %c0_62 = arith.constant 0 : index
    %134 = vector.load %arg8[%c0_61, %c0_62] : memref<1x32xf32, #tpu.memory_space<vmem>>, vector<1x32xf32>
    %135 = vector.broadcast %134 : vector<1x32xf32> to vector<8x32xf32>
    %136 = arith.addf %133, %135 : vector<8x32xf32>
    %137 = arith.addf %7, %136 : vector<8x32xf32>
    %c0_63 = arith.constant 0 : index
    %c0_64 = arith.constant 0 : index
    %c0_65 = arith.constant 0 : index
    %138 = vector.load %arg9[%c0_63, %c0_64, %c0_65] : memref<1x8x32xf32, #tpu.memory_space<vmem>>, vector<1x8x32xf32>
    %139 = vector.shape_cast %138 : vector<1x8x32xf32> to vector<8x32xf32>
    %140 = vector.shape_cast %137 : vector<8x32xf32> to vector<1x8x32xf32>
    tpu.vector_store %arg9[%c0_63, %c0_64, %c0_65], %140 {strides = array<i32>} : memref<1x8x32xf32, #tpu.memory_space<vmem>>, vector<1x8x32xf32>,
    return
  }
  func.func @transform_0(%arg0: i32, %arg1: i32) -> (i32, i32, i32) {
    %c0_i32 = arith.constant 0 : i32
    %c0_i32_0 = arith.constant 0 : i32
    %c0_i32_1 = arith.constant 0 : i32
    return %arg0, %c0_i32, %c0_i32_0 : i32, i32, i32
  }
  func.func @transform_1(%arg0: i32, %arg1: i32) -> (i32, i32) {
    %c0_i32 = arith.constant 0 : i32
    %c0_i32_0 = arith.constant 0 : i32
    %c0_i32_1 = arith.constant 0 : i32
    return %c0_i32, %c0_i32_0 : i32, i32
  }
  func.func @transform_2(%arg0: i32, %arg1: i32) -> (i32, i32) {
    %c0_i32 = arith.constant 0 : i32
    %c0_i32_0 = arith.constant 0 : i32
    %c0_i32_1 = arith.constant 0 : i32
    return %c0_i32, %c0_i32_0 : i32, i32
  }
  func.func @transform_3(%arg0: i32, %arg1: i32) -> (i32, i32) {
    %c0_i32 = arith.constant 0 : i32
    %c0_i32_0 = arith.constant 0 : i32
    %c0_i32_1 = arith.constant 0 : i32
    return %c0_i32, %c0_i32_0 : i32, i32
  }
  func.func @transform_4(%arg0: i32, %arg1: i32) -> (i32, i32) {
    %c0_i32 = arith.constant 0 : i32
    %c0_i32_0 = arith.constant 0 : i32
    %c0_i32_1 = arith.constant 0 : i32
    return %c0_i32, %c0_i32_0 : i32, i32
  }
  func.func @transform_5(%arg0: i32, %arg1: i32) -> (i32, i32) {
    %c0_i32 = arith.constant 0 : i32
    %c0_i32_0 = arith.constant 0 : i32
    %c0_i32_1 = arith.constant 0 : i32
    return %c0_i32, %c0_i32_0 : i32, i32
  }
  func.func @transform_6(%arg0: i32, %arg1: i32) -> (i32, i32) {
    %c0_i32 = arith.constant 0 : i32
    %c0_i32_0 = arith.constant 0 : i32
    %c0_i32_1 = arith.constant 0 : i32
    return %c0_i32, %c0_i32_0 : i32, i32
  }
  func.func @transform_7(%arg0: i32, %arg1: i32) -> (i32, i32, i32) {
    %c0_i32 = arith.constant 0 : i32
    %c0_i32_0 = arith.constant 0 : i32
    return %arg0, %arg1, %c0_i32 : i32, i32, i32
  }
}

module attributes {stable_mosaic.version = 11 : i64} {
  func.func @moe_kernel(%arg0: i32, %arg1: i32, %arg2: memref<16x32xf32, #tpu.memory_space<vmem>>, %arg3: memref<16x4xf32, #tpu.memory_space<vmem>>, %arg4: memref<1x32xf32, #tpu.memory_space<vmem>>, %arg5: memref<1x32xf32, #tpu.memory_space<vmem>>, %arg6: memref<1x32x128xbf16, #tpu.memory_space<vmem>>, %arg7: memref<1x1x128xf32, #tpu.memory_space<vmem>>, %arg8: memref<1x128x32xbf16, #tpu.memory_space<vmem>>, %arg9: memref<1x1x32xf32, #tpu.memory_space<vmem>>, %arg10: memref<16x32xf32, #tpu.memory_space<vmem>>, %arg11: memref<16x32xbf16, #tpu.memory_space<vmem>>, %arg12: memref<16x32xf32, #tpu.memory_space<vmem>>) attributes {dimension_semantics = [#tpu.dimension_semantics<parallel>, #tpu.dimension_semantics<arbitrary>], iteration_bounds = array<i64: 1, 4>, scalar_prefetch = 0 : i64, scratch_operands = 2 : i64, tpu.core_type = #tpu.core_type<tc>, window_params = [{transform_indices = @transform_0, window_bounds = array<i64: 16, 32>}, {transform_indices = @transform_1, window_bounds = array<i64: 16, 4>}, {pipeline_mode = #tpu.pipeline_mode<synchronous>, transform_indices = @transform_2, window_bounds = array<i64: 1, 32>}, {pipeline_mode = #tpu.pipeline_mode<synchronous>, transform_indices = @transform_3, window_bounds = array<i64: 1, 32>}, {transform_indices = @transform_4, window_bounds = array<i64: 1, 32, 128>}, {transform_indices = @transform_5, window_bounds = array<i64: 1, 1, 128>}, {transform_indices = @transform_6, window_bounds = array<i64: 1, 128, 32>}, {transform_indices = @transform_7, window_bounds = array<i64: 1, 1, 32>}, {transform_indices = @transform_8, window_bounds = array<i64: 16, 32>}]} {
    %c0_i32 = arith.constant 0 : i32
    %0 = arith.cmpi eq, %arg1, %c0_i32 : i32
    %1 = arith.extui %0 : i1 to i32
    %c0_i32_0 = arith.constant 0 : i32
    %2 = arith.cmpi ne, %1, %c0_i32_0 : i32
    scf.if %2 {
      %c0_25 = arith.constant 0 : index
      %c0_26 = arith.constant 0 : index
      %37 = vector.load %arg2[%c0_25, %c0_26] : memref<16x32xf32, #tpu.memory_space<vmem>>, vector<16x32xf32>
      %c0_27 = arith.constant 0 : index
      %c0_28 = arith.constant 0 : index
      %38 = vector.load %arg4[%c0_27, %c0_28] : memref<1x32xf32, #tpu.memory_space<vmem>>, vector<1x32xf32>
      %c0_29 = arith.constant 0 : index
      %c0_30 = arith.constant 0 : index
      %39 = vector.load %arg5[%c0_29, %c0_30] : memref<1x32xf32, #tpu.memory_space<vmem>>, vector<1x32xf32>
      %cst_31 = arith.constant dense<0.000000e+00> : vector<16xf32>
      %40 = vector.multi_reduction <add>, %37, %cst_31 [1] : vector<16x32xf32> to vector<16xf32>
      %41 = vector.shape_cast %40 : vector<16xf32> to vector<16x1xf32>
      %cst_32 = arith.constant 3.200000e+01 : f32
      %42 = vector.broadcast %cst_32 : f32 to vector<16x1xf32>
      %43 = arith.divf %41, %42 : vector<16x1xf32>
      %44 = vector.broadcast %43 : vector<16x1xf32> to vector<16x32xf32>
      %45 = arith.subf %37, %44 : vector<16x32xf32>
      %46 = arith.mulf %45, %45 : vector<16x32xf32>
      %cst_33 = arith.constant dense<0.000000e+00> : vector<16xf32>
      %47 = vector.multi_reduction <add>, %46, %cst_33 [1] : vector<16x32xf32> to vector<16xf32>
      %48 = vector.shape_cast %47 : vector<16xf32> to vector<16x1xf32>
      %cst_34 = arith.constant 3.200000e+01 : f32
      %49 = vector.broadcast %cst_34 : f32 to vector<16x1xf32>
      %50 = arith.divf %48, %49 : vector<16x1xf32>
      %51 = vector.broadcast %43 : vector<16x1xf32> to vector<16x32xf32>
      %52 = arith.subf %37, %51 : vector<16x32xf32>
      %cst_35 = arith.constant 9.99999974E-6 : f32
      %53 = vector.broadcast %cst_35 : f32 to vector<16x1xf32>
      %54 = arith.addf %50, %53 : vector<16x1xf32>
      %55 = math.rsqrt %54 : vector<16x1xf32>
      %56 = vector.broadcast %55 : vector<16x1xf32> to vector<16x32xf32>
      %57 = arith.mulf %52, %56 : vector<16x32xf32>
      %58 = vector.broadcast %38 : vector<1x32xf32> to vector<16x32xf32>
      %59 = arith.mulf %57, %58 : vector<16x32xf32>
      %60 = vector.broadcast %39 : vector<1x32xf32> to vector<16x32xf32>
      %61 = arith.addf %59, %60 : vector<16x32xf32>
      %62 = arith.truncf %61 : vector<16x32xf32> to vector<16x32xbf16>
      %c0_36 = arith.constant 0 : index
      %c0_37 = arith.constant 0 : index
      %63 = vector.load %arg11[%c0_36, %c0_37] : memref<16x32xbf16, #tpu.memory_space<vmem>>, vector<16x32xbf16>
      tpu.vector_store %arg11[%c0_36, %c0_37], %62 {strides = array<i32>} : memref<16x32xbf16, #tpu.memory_space<vmem>>, vector<16x32xbf16>,
      %cst_38 = arith.constant 0.000000e+00 : f32
      %64 = vector.broadcast %cst_38 : f32 to vector<16x32xf32>
      %c0_39 = arith.constant 0 : index
      %c0_40 = arith.constant 0 : index
      %65 = vector.load %arg12[%c0_39, %c0_40] : memref<16x32xf32, #tpu.memory_space<vmem>>, vector<16x32xf32>
      tpu.vector_store %arg12[%c0_39, %c0_40], %64 {strides = array<i32>} : memref<16x32xf32, #tpu.memory_space<vmem>>, vector<16x32xf32>,
    } else {
    }
    %c0 = arith.constant 0 : index
    %c0_1 = arith.constant 0 : index
    %3 = vector.load %arg11[%c0, %c0_1] : memref<16x32xbf16, #tpu.memory_space<vmem>>, vector<16x32xbf16>
    %c0_2 = arith.constant 0 : index
    %c0_3 = arith.constant 0 : index
    %c0_4 = arith.constant 0 : index
    %4 = vector.load %arg6[%c0_2, %c0_3, %c0_4] : memref<1x32x128xbf16, #tpu.memory_space<vmem>>, vector<1x32x128xbf16>
    %5 = vector.shape_cast %4 : vector<1x32x128xbf16> to vector<32x128xbf16>
    %cst = arith.constant dense<0.000000e+00> : vector<16x128xf32>
    %6 = tpu.matmul %3, %5, %cst {dimension_numbers = #tpu.dot_dimension_numbers<[1], [0], [0], [1], [0, 0, 1, 1], [], []>} : vector<16x32xbf16>, vector<32x128xbf16>, vector<16x128xf32> -> vector<16x128xf32>
    %c0_5 = arith.constant 0 : index
    %c0_6 = arith.constant 0 : index
    %c0_7 = arith.constant 0 : index
    %7 = vector.load %arg7[%c0_5, %c0_6, %c0_7] : memref<1x1x128xf32, #tpu.memory_space<vmem>>, vector<1x1x128xf32>
    %8 = vector.shape_cast %7 : vector<1x1x128xf32> to vector<1x128xf32>
    %9 = vector.broadcast %8 : vector<1x128xf32> to vector<16x128xf32>
    %10 = arith.addf %6, %9 : vector<16x128xf32>
    %cst_8 = arith.constant 0.000000e+00 : f32
    %11 = vector.broadcast %cst_8 : f32 to vector<16x128xf32>
    %12 = arith.maximumf %10, %11 : vector<16x128xf32>
    %13 = arith.truncf %12 : vector<16x128xf32> to vector<16x128xbf16>
    %c0_9 = arith.constant 0 : index
    %c0_10 = arith.constant 0 : index
    %c0_11 = arith.constant 0 : index
    %14 = vector.load %arg8[%c0_9, %c0_10, %c0_11] : memref<1x128x32xbf16, #tpu.memory_space<vmem>>, vector<1x128x32xbf16>
    %15 = vector.shape_cast %14 : vector<1x128x32xbf16> to vector<128x32xbf16>
    %cst_12 = arith.constant dense<0.000000e+00> : vector<16x32xf32>
    %16 = tpu.matmul %13, %15, %cst_12 {dimension_numbers = #tpu.dot_dimension_numbers<[1], [0], [0], [1], [0, 0, 1, 1], [], []>} : vector<16x128xbf16>, vector<128x32xbf16>, vector<16x32xf32> -> vector<16x32xf32>
    %c0_13 = arith.constant 0 : index
    %c0_14 = arith.constant 0 : index
    %c0_15 = arith.constant 0 : index
    %17 = vector.load %arg9[%c0_13, %c0_14, %c0_15] : memref<1x1x32xf32, #tpu.memory_space<vmem>>, vector<1x1x32xf32>
    %18 = vector.shape_cast %17 : vector<1x1x32xf32> to vector<1x32xf32>
    %19 = vector.broadcast %18 : vector<1x32xf32> to vector<16x32xf32>
    %20 = arith.addf %16, %19 : vector<16x32xf32>
    %c0_16 = arith.constant 0 : index
    %c0_17 = arith.constant 0 : index
    %21 = vector.load %arg3[%c0_16, %c0_17] : memref<16x4xf32, #tpu.memory_space<vmem>>, vector<16x4xf32>
    %22 = tpu.iota {dimensions = array<i32: 1>} : vector<16x4xi32>
    %23 = vector.broadcast %arg1 : i32 to vector<16x4xi32>
    %24 = arith.cmpi eq, %22, %23 : vector<16x4xi32>
    %cst_18 = arith.constant 0.000000e+00 : f32
    %25 = vector.broadcast %cst_18 : f32 to vector<16x4xf32>
    %26 = arith.select %24, %21, %25 : vector<16x4xi1>, vector<16x4xf32>
    %cst_19 = arith.constant dense<0.000000e+00> : vector<16xf32>
    %27 = vector.multi_reduction <add>, %26, %cst_19 [1] : vector<16x4xf32> to vector<16xf32>
    %28 = vector.shape_cast %27 : vector<16xf32> to vector<16x1xf32>
    %c0_20 = arith.constant 0 : index
    %c0_21 = arith.constant 0 : index
    %29 = vector.load %arg12[%c0_20, %c0_21] : memref<16x32xf32, #tpu.memory_space<vmem>>, vector<16x32xf32>
    %30 = vector.broadcast %28 : vector<16x1xf32> to vector<16x32xf32>
    %31 = arith.mulf %30, %20 : vector<16x32xf32>
    %32 = arith.addf %29, %31 : vector<16x32xf32>
    %c0_22 = arith.constant 0 : index
    %c0_23 = arith.constant 0 : index
    %33 = vector.load %arg12[%c0_22, %c0_23] : memref<16x32xf32, #tpu.memory_space<vmem>>, vector<16x32xf32>
    tpu.vector_store %arg12[%c0_22, %c0_23], %32 {strides = array<i32>} : memref<16x32xf32, #tpu.memory_space<vmem>>, vector<16x32xf32>,
    %c3_i32 = arith.constant 3 : i32
    %34 = arith.cmpi eq, %arg1, %c3_i32 : i32
    %35 = arith.extui %34 : i1 to i32
    %c0_i32_24 = arith.constant 0 : i32
    %36 = arith.cmpi ne, %35, %c0_i32_24 : i32
    scf.if %36 {
      %c0_25 = arith.constant 0 : index
      %c0_26 = arith.constant 0 : index
      %37 = vector.load %arg2[%c0_25, %c0_26] : memref<16x32xf32, #tpu.memory_space<vmem>>, vector<16x32xf32>
      %c0_27 = arith.constant 0 : index
      %c0_28 = arith.constant 0 : index
      %38 = vector.load %arg12[%c0_27, %c0_28] : memref<16x32xf32, #tpu.memory_space<vmem>>, vector<16x32xf32>
      %39 = arith.addf %37, %38 : vector<16x32xf32>
      %c0_29 = arith.constant 0 : index
      %c0_30 = arith.constant 0 : index
      %40 = vector.load %arg10[%c0_29, %c0_30] : memref<16x32xf32, #tpu.memory_space<vmem>>, vector<16x32xf32>
      tpu.vector_store %arg10[%c0_29, %c0_30], %39 {strides = array<i32>} : memref<16x32xf32, #tpu.memory_space<vmem>>, vector<16x32xf32>,
    } else {
    }
    return
  }
  func.func @transform_0(%arg0: i32, %arg1: i32) -> (i32, i32) {
    %c0_i32 = arith.constant 0 : i32
    %c0_i32_0 = arith.constant 0 : i32
    return %arg0, %c0_i32 : i32, i32
  }
  func.func @transform_1(%arg0: i32, %arg1: i32) -> (i32, i32) {
    %c0_i32 = arith.constant 0 : i32
    %c0_i32_0 = arith.constant 0 : i32
    return %arg0, %c0_i32 : i32, i32
  }
  func.func @transform_2(%arg0: i32, %arg1: i32) -> (i32, i32) {
    %c0_i32 = arith.constant 0 : i32
    %c0_i32_0 = arith.constant 0 : i32
    %c0_i32_1 = arith.constant 0 : i32
    return %c0_i32, %c0_i32_0 : i32, i32
  }
  func.func @transform_3(%arg0: i32, %arg1: i32) -> (i32, i32) {
    %c0_i32 = arith.constant 0 : i32
    %c0_i32_0 = arith.constant 0 : i32
    %c0_i32_1 = arith.constant 0 : i32
    return %c0_i32, %c0_i32_0 : i32, i32
  }
  func.func @transform_4(%arg0: i32, %arg1: i32) -> (i32, i32, i32) {
    %c0_i32 = arith.constant 0 : i32
    %c0_i32_0 = arith.constant 0 : i32
    %c0_i32_1 = arith.constant 0 : i32
    return %arg1, %c0_i32, %c0_i32_0 : i32, i32, i32
  }
  func.func @transform_5(%arg0: i32, %arg1: i32) -> (i32, i32, i32) {
    %c0_i32 = arith.constant 0 : i32
    %c0_i32_0 = arith.constant 0 : i32
    %c0_i32_1 = arith.constant 0 : i32
    return %arg1, %c0_i32, %c0_i32_0 : i32, i32, i32
  }
  func.func @transform_6(%arg0: i32, %arg1: i32) -> (i32, i32, i32) {
    %c0_i32 = arith.constant 0 : i32
    %c0_i32_0 = arith.constant 0 : i32
    %c0_i32_1 = arith.constant 0 : i32
    return %arg1, %c0_i32, %c0_i32_0 : i32, i32, i32
  }
  func.func @transform_7(%arg0: i32, %arg1: i32) -> (i32, i32, i32) {
    %c0_i32 = arith.constant 0 : i32
    %c0_i32_0 = arith.constant 0 : i32
    %c0_i32_1 = arith.constant 0 : i32
    return %arg1, %c0_i32, %c0_i32_0 : i32, i32, i32
  }
  func.func @transform_8(%arg0: i32, %arg1: i32) -> (i32, i32) {
    %c0_i32 = arith.constant 0 : i32
    %c0_i32_0 = arith.constant 0 : i32
    return %arg0, %c0_i32 : i32, i32
  }
}

</mosaic_0001>

<llo_original>
// kernel: block_forward.2
$region0: #{block_forward.2}
  #allocation0 [shape = 'u32[]', space=smem, size = 0x4, offset = 0x4, fixed_abs, tag = 'smem constant byte address 0x4 - core index']
  #allocation1 [shape = 'u32[144,128]{1,0:T(1,128)}', space=vmem, size = 0x12000, scoped, tag = 'internal scratch']
  #allocation2 [shape = 'bf16[8,32]{1,0:T(8,128)(2,1)}', space=vmem, size = 0x800, scoped, tag = 'scratch operand']
  #allocation3 [shape = 'bf16[8,32]{1,0:T(8,128)(2,1)}', space=vmem, size = 0x800, scoped, tag = 'scratch operand']
  #allocation4 [shape = 'bf16[8,32]{1,0:T(8,128)(2,1)}', space=vmem, size = 0x800, scoped, tag = 'scratch operand']
  %s0 = inlined_call_operand.vmem [shape: f32[2,8,32], index: 0, kind: input, shape index: {}]
  %s1 = inlined_call_operand.vmem [shape: f32[1,32], index: 1, kind: input, shape index: {}]
  %s2 = inlined_call_operand.vmem [shape: f32[1,32], index: 2, kind: input, shape index: {}]
  %s3 = inlined_call_operand.vmem [shape: bf16[32,32], index: 3, kind: input, shape index: {}]
  %s4 = inlined_call_operand.vmem [shape: bf16[32,64], index: 4, kind: input, shape index: {}]
  %s5 = inlined_call_operand.vmem [shape: bf16[32,32], index: 5, kind: input, shape index: {}]
  %s6 = inlined_call_operand.vmem [shape: f32[1,32], index: 6, kind: input, shape index: {}]
  %s7 = inlined_call_operand.vmem [shape: f32[2,8,32], index: 7, kind: output, shape index: {}]
  %s8 = sld [smem:[#allocation0]]
  $region65: #{block_forward.2} parent=0
    _
  %s10 = ssub.s32 1, %s8
  %s11 = scalar_select 0, %s10, %s8
  loop: start=0, step=1, limit=4
  $region2: #{block_forward.2} parent=0 // loop_pre_header
    _
  $region3: #{block_forward.2} parent=0 // loop_header
    %s13 = sphi 0, %s17
    %p14 = scmp.ge.s32.totalorder %s13, 4
    %s20 = sphi 0, %s32
    %s21 = sphi 0, %s28
    %s22 = sphi 0, %s20
    %s23 = sphi 0, %s21
    %s24 = sphi 0, %s22
    %s25 = sphi 0, %s23
    %s35 = sphi 0, %s37
    %s38 = sphi 0, %s35
    %s39 = sphi 0, %s38
    %s55 = sphi 0, %s39
    %s59 = sphi 0, %s59
    %s61 = sphi 0, %s59
    %s62 = sphi 0, %s61
    %s76 = sphi 0, %s62
    %s80 = sphi 0, %s80
    %s82 = sphi 0, %s80
    %s83 = sphi 0, %s82
    %s97 = sphi 0, %s83
    %s101 = sphi 0, %s101
    %s103 = sphi 0, %s101
    %s104 = sphi 0, %s103
    %s118 = sphi 0, %s104
    %s122 = sphi 0, %s122
    %s124 = sphi 0, %s122
    %s125 = sphi 0, %s124
    %s139 = sphi 0, %s125
    %s143 = sphi 0, %s143
    %s145 = sphi 0, %s143
    %s146 = sphi 0, %s145
    %s160 = sphi 0, %s146
    %s164 = sphi 0, %s164
    %s166 = sphi 0, %s164
    %s167 = sphi 0, %s166
    %s181 = sphi 0, %s167
    %s189 = sphi 0, %s191
    %s192 = sphi 0, %s189
    %s193 = sphi 0, %s192
    %s209 = sphi 0, %s193
  $region4: #{block_forward.2} parent=0 // loop_header_branch
    %16 = sbr.rel (%p14) target = $region8
  $region5: #{block_forward.2} parent=0 // loop_body
    %s18 = ssub.s32 %s13, 1
    %s19 = ssub.s32 %s13, 2
    %s26 = sadd.s32 1, %s21
    %p27 = scmp.ge.s32.totalorder %s26, 1
    %s28 = scalar_select %p27, 0, %s26
    %s29 = sadd.s32 1, %s20
    %s30 = scalar_select %p27, %s29, %s20
    %p31 = scmp.ge.s32.totalorder %s30, 2
    %s32 = scalar_select %p31, 0, %s30
    %s33 = ssub.s32 %s20, %s32
    %p34 = scmp.eq.s32.totalorder %s33, 0
    %s36 = sadd.s32 %s35, 1
    %s37 = scalar_select %p34, %s35, %s36
    %p40 = pneg %p34
    %p41 = scmp.eq.s32.totalorder %s13, 1
    %p42 = por %p40, %p41
    %p43 = scmp.ne.s32.totalorder %s35, %s38
    %p44 = scmp.eq.s32.totalorder %s13, 0
    %p45 = por %p43, %p44
    %p46 = scmp.ne.s32.totalorder %s35, %s38
    %p47 = scmp.eq.s32.totalorder %s18, 1
    %p48 = por %p46, %p47
    %p49 = scmp.ne.s32.totalorder %s38, %s39
    %p50 = scmp.eq.s32.totalorder %s18, 0
    %p51 = por %p49, %p50
    %p52 = scmp.ne.s32.totalorder %s38, %s39
    %p53 = scmp.eq.s32.totalorder %s19, 1
    %p54 = por %p52, %p53
    %p56 = scmp.ne.s32.totalorder %s39, %s55
    %p57 = scmp.eq.s32.totalorder %s19, 0
    %p58 = por %p56, %p57
    %s60 = sadd.s32 %s59, 1
    %p63 = scmp.eq.s32.totalorder %s13, 1
    %p64 = scmp.ne.s32.totalorder %s59, %s61
    %p65 = scmp.eq.s32.totalorder %s13, 0
    %p66 = por %p64, %p65
    %p67 = scmp.ne.s32.totalorder %s59, %s61
    %p68 = scmp.eq.s32.totalorder %s18, 1
    %p69 = por %p67, %p68
    %p70 = scmp.ne.s32.totalorder %s61, %s62
    %p71 = scmp.eq.s32.totalorder %s18, 0
    %p72 = por %p70, %p71
    %p73 = scmp.ne.s32.totalorder %s61, %s62
    %p74 = scmp.eq.s32.totalorder %s19, 1
    %p75 = por %p73, %p74
    %p77 = scmp.ne.s32.totalorder %s62, %s76
    %p78 = scmp.eq.s32.totalorder %s19, 0
    %p79 = por %p77, %p78
    %s81 = sadd.s32 %s80, 1
    %p84 = scmp.eq.s32.totalorder %s13, 1
    %p85 = scmp.ne.s32.totalorder %s80, %s82
    %p86 = scmp.eq.s32.totalorder %s13, 0
    %p87 = por %p85, %p86
    %p88 = scmp.ne.s32.totalorder %s80, %s82
    %p89 = scmp.eq.s32.totalorder %s18, 1
    %p90 = por %p88, %p89
    %p91 = scmp.ne.s32.totalorder %s82, %s83
    %p92 = scmp.eq.s32.totalorder %s18, 0
    %p93 = por %p91, %p92
    %p94 = scmp.ne.s32.totalorder %s82, %s83
    %p95 = scmp.eq.s32.totalorder %s19, 1
    %p96 = por %p94, %p95
    %p98 = scmp.ne.s32.totalorder %s83, %s97
    %p99 = scmp.eq.s32.totalorder %s19, 0
    %p100 = por %p98, %p99
    %s102 = sadd.s32 %s101, 1
    %p105 = scmp.eq.s32.totalorder %s13, 1
    %p106 = scmp.ne.s32.totalorder %s101, %s103
    %p107 = scmp.eq.s32.totalorder %s13, 0
    %p108 = por %p106, %p107
    %p109 = scmp.ne.s32.totalorder %s101, %s103
    %p110 = scmp.eq.s32.totalorder %s18, 1
    %p111 = por %p109, %p110
    %p112 = scmp.ne.s32.totalorder %s103, %s104
    %p113 = scmp.eq.s32.totalorder %s18, 0
    %p114 = por %p112, %p113
    %p115 = scmp.ne.s32.totalorder %s103, %s104
    %p116 = scmp.eq.s32.totalorder %s19, 1
    %p117 = por %p115, %p116
    %p119 = scmp.ne.s32.totalorder %s104, %s118
    %p120 = scmp.eq.s32.totalorder %s19, 0
    %p121 = por %p119, %p120
    %s123 = sadd.s32 %s122, 1
    %p126 = scmp.eq.s32.totalorder %s13, 1
    %p127 = scmp.ne.s32.totalorder %s122, %s124
    %p128 = scmp.eq.s32.totalorder %s13, 0
    %p129 = por %p127, %p128
    %p130 = scmp.ne.s32.totalorder %s122, %s124
    %p131 = scmp.eq.s32.totalorder %s18, 1
    %p132 = por %p130, %p131
    %p133 = scmp.ne.s32.totalorder %s124, %s125
    %p134 = scmp.eq.s32.totalorder %s18, 0
    %p135 = por %p133, %p134
    %p136 = scmp.ne.s32.totalorder %s124, %s125
    %p137 = scmp.eq.s32.totalorder %s19, 1
    %p138 = por %p136, %p137
    %p140 = scmp.ne.s32.totalorder %s125, %s139
    %p141 = scmp.eq.s32.totalorder %s19, 0
    %p142 = por %p140, %p141
    %s144 = sadd.s32 %s143, 1
    %p147 = scmp.eq.s32.totalorder %s13, 1
    %p148 = scmp.ne.s32.totalorder %s143, %s145
    %p149 = scmp.eq.s32.totalorder %s13, 0
    %p150 = por %p148, %p149
    %p151 = scmp.ne.s32.totalorder %s143, %s145
    %p152 = scmp.eq.s32.totalorder %s18, 1
    %p153 = por %p151, %p152
    %p154 = scmp.ne.s32.totalorder %s145, %s146
    %p155 = scmp.eq.s32.totalorder %s18, 0
    %p156 = por %p154, %p155
    %p157 = scmp.ne.s32.totalorder %s145, %s146
    %p158 = scmp.eq.s32.totalorder %s19, 1
    %p159 = por %p157, %p158
    %p161 = scmp.ne.s32.totalorder %s146, %s160
    %p162 = scmp.eq.s32.totalorder %s19, 0
    %p163 = por %p161, %p162
    %s165 = sadd.s32 %s164, 1
    %p168 = scmp.eq.s32.totalorder %s13, 1
    %p169 = scmp.ne.s32.totalorder %s164, %s166
    %p170 = scmp.eq.s32.totalorder %s13, 0
    %p171 = por %p169, %p170
    %p172 = scmp.ne.s32.totalorder %s164, %s166
    %p173 = scmp.eq.s32.totalorder %s18, 1
    %p174 = por %p172, %p173
    %p175 = scmp.ne.s32.totalorder %s166, %s167
    %p176 = scmp.eq.s32.totalorder %s18, 0
    %p177 = por %p175, %p176
    %p178 = scmp.ne.s32.totalorder %s166, %s167
    %p179 = scmp.eq.s32.totalorder %s19, 1
    %p180 = por %p178, %p179
    %p182 = scmp.ne.s32.totalorder %s167, %s181
    %p183 = scmp.eq.s32.totalorder %s19, 0
    %p184 = por %p182, %p183
    %s185 = ssub.s32 %s20, %s32
    %s186 = ssub.s32 %s21, %s28
    %s187 = sor.u32 %s185, %s186
    %p188 = scmp.eq.s32.totalorder %s187, 0
    %s190 = sadd.s32 %s189, 1
    %s191 = scalar_select %p188, %s189, %s190
    %p194 = pneg %p188
    %p195 = scmp.eq.s32.totalorder %s13, 1
    %p196 = por %p194, %p195
    %p197 = scmp.ne.s32.totalorder %s189, %s192
    %p198 = scmp.eq.s32.totalorder %s13, 0
    %p199 = por %p197, %p198
    %p200 = scmp.ne.s32.totalorder %s189, %s192
    %p201 = scmp.eq.s32.totalorder %s18, 1
    %p202 = por %p200, %p201
    %p203 = scmp.ne.s32.totalorder %s192, %s193
    %p204 = scmp.eq.s32.totalorder %s18, 0
    %p205 = por %p203, %p204
    %p206 = scmp.ne.s32.totalorder %s192, %s193
    %p207 = scmp.eq.s32.totalorder %s19, 1
    %p208 = por %p206, %p207
    %p210 = scmp.ne.s32.totalorder %s193, %s209
    %p211 = scmp.eq.s32.totalorder %s19, 0
    %p212 = por %p210, %p211
    %p213 = scmp.le.s32.totalorder 1, %s13
    %p214 = scmp.lt.s32.totalorder %s13, 3
    %p215 = pnand %p213, %p214
    %p216 = pneg %p215
    // Predicated region
    $region9: #{block_forward.2} parent=5 // pred_check
      _
    $region10: #{block_forward.2} parent=5 // pred_check_branch
      %218 = sbr.rel (%p215) target = $region12
    $region11: #{block_forward.2} parent=5 // pred_region
      %s219 = ssub.s32 %s13, 1
      // Predicated region
      $region13: #{block_forward.2} parent=11 // pred_check
        %p220 = pneg %p72
      $region14: #{block_forward.2} parent=11 // pred_check_branch
        %222 = sbr.rel (%p220) target = $region16
      $region15: #{block_forward.2} parent=11 // pred_region
        _
      $region16: #{block_forward.2} parent=11 // pred_fallthru
        _
      // Predicated region
      $region17: #{block_forward.2} parent=11 // pred_check
        %p223 = pneg %p93
      $region18: #{block_forward.2} parent=11 // pred_check_branch
        %225 = sbr.rel (%p223) target = $region20
      $region19: #{block_forward.2} parent=11 // pred_region
        _
      $region20: #{block_forward.2} parent=11 // pred_fallthru
        _
      // Predicated region
      $region21: #{block_forward.2} parent=11 // pred_check
        %p226 = pneg %p114
      $region22: #{block_forward.2} parent=11 // pred_check_branch
        %228 = sbr.rel (%p226) target = $region24
      $region23: #{block_forward.2} parent=11 // pred_region
        _
      $region24: #{block_forward.2} parent=11 // pred_fallthru
        _
      // Predicated region
      $region25: #{block_forward.2} parent=11 // pred_check
        %p229 = pneg %p135
      $region26: #{block_forward.2} parent=11 // pred_check_branch
        %231 = sbr.rel (%p229) target = $region28
      $region27: #{block_forward.2} parent=11 // pred_region
        _
      $region28: #{block_forward.2} parent=11 // pred_fallthru
        _
      // Predicated region
      $region29: #{block_forward.2} parent=11 // pred_check
        %p232 = pneg %p156
      $region30: #{block_forward.2} parent=11 // pred_check_branch
        %234 = sbr.rel (%p232) target = $region32
      $region31: #{block_forward.2} parent=11 // pred_region
        _
      $region32: #{block_forward.2} parent=11 // pred_fallthru
        _
      // Predicated region
      $region33: #{block_forward.2} parent=11 // pred_check
        %p235 = pneg %p177
      $region34: #{block_forward.2} parent=11 // pred_check_branch
        %237 = sbr.rel (%p235) target = $region36
      $region35: #{block_forward.2} parent=11 // pred_region
        _
      $region36: #{block_forward.2} parent=11 // pred_fallthru
        _
    $region12: #{block_forward.2} parent=5 // pred_fallthru
      _
    %p238 = scmp.lt.s32.totalorder %s13, 2
    // Predicated region
    $region37: #{block_forward.2} parent=5 // pred_check
      %p239 = pneg %p238
    $region38: #{block_forward.2} parent=5 // pred_check_branch
      %241 = sbr.rel (%p239) target = $region40
    $region39: #{block_forward.2} parent=5 // pred_region
      // Predicated region
      $region41: #{block_forward.2} parent=39 // pred_check
        %p242 = pneg %p45
      $region42: #{block_forward.2} parent=39 // pred_check_branch
        %244 = sbr.rel (%p242) target = $region44
      $region43: #{block_forward.2} parent=39 // pred_region
        %p245 = scmp.lt.s32.totalorder %s20, 1
        %s246 = scalar_select %p245, %s20, 1
        %s247 = smul.addr %s246, 8
        %s248 = scalar_lea.vmem %s0, %s247
      $region44: #{block_forward.2} parent=39 // pred_fallthru
        _
    $region40: #{block_forward.2} parent=5 // pred_fallthru
      _
    %p249 = scmp.le.s32.totalorder 1, %s13
    %p250 = scmp.lt.s32.totalorder %s13, 3
    %p251 = pnand %p249, %p250
    %p252 = pneg %p251
    // Predicated region
    $region45: #{block_forward.2} parent=5 // pred_check
      _
    $region46: #{block_forward.2} parent=5 // pred_check_branch
      %254 = sbr.rel (%p251) target = $region48
    $region47: #{block_forward.2} parent=5 // pred_region
      %s255 = ssub.s32 %s13, 1
      %p256 = scmp.lt.s32.totalorder %s22, 1
      %s257 = scalar_select %p256, %s22, 1
      %s258 = smul.addr %s257, 8
      %s259 = scalar_lea.vmem %s0, %s258
      %p260 = pneg %p51
      %p261 = pneg %p48
      %p262 = pneg %p72
      %p263 = pneg %p69
      %p264 = pneg %p93
      %p265 = pneg %p90
      %p266 = pneg %p114
      %p267 = pneg %p111
      %p268 = pneg %p135
      %p269 = pneg %p132
      %p270 = pneg %p156
      %p271 = pneg %p153
      %p272 = pneg %p177
      %p273 = pneg %p174
      %p274 = pneg %p205
      %p275 = pneg %p202
      %p276 = scmp.lt.s32.totalorder %s22, 1
      %s277 = scalar_select %p276, %s22, 1
      %p278 = scmp.lt.s32.totalorder %s23, 0
      %s279 = scalar_select %p278, %s23, 0
      %s280 = sadd.s32 %s279, %s277
      %s281 = smul.addr %s280, 8
      %s282 = scalar_lea.vmem %s7, %s281
      %p283 = scmp.lt.s32.totalorder %s22, 1
      %s284 = scalar_select %p283, %s22, 1
      %s285 = smul.addr %s284, 8
      %s286 = scalar_lea.vmem %s0, %s285
      %p287 = scmp.lt.s32.totalorder %s22, 1
      %s288 = scalar_select %p287, %s22, 1
      %p289 = scmp.lt.s32.totalorder %s23, 0
      %s290 = scalar_select %p289, %s23, 0
      %s291 = sadd.s32 %s290, %s288
      %s292 = smul.addr %s291, 8
      %s293 = scalar_lea.vmem %s7, %s292
      %p295 = scmp.eq.s32.totalorder %s23, 0
      // Predicated region
      $region49: #{block_forward.2} parent=47 // pred_check
        %p296 = pneg %p295
      $region50: #{block_forward.2} parent=47 // pred_check_branch
        %298 = sbr.rel (%p296) target = $region52
      $region51: #{block_forward.2} parent=47 // pred_region
        %v299 = vld [vmem:[%s286] sm:$0xff]
        %v300 = vld [vmem:[%s1] sm:$0x1]
        %v301 = vld [vmem:[%s2] sm:$0x1]
        %vm302 = vcmask 261120
        %v303 = vsel %vm302, %v299, 0.0
        %304 = vadd.xlane.f32.xlu0 %v303
        %v305 = vpop.xlane.xlu0 %304
        %v306 = vrcp.pop 32.0
        %v307 = vmul.f32 %v305, %v306
        %v308 = vsub.f32 %v299, %v307
        %v309 = vmul.f32 %v308, %v308
        %v310 = vsel %vm302, %v309, 0.0
        %311 = vadd.xlane.f32.xlu0 %v310
        %v312 = vpop.xlane.xlu0 %311
        %v313 = vmul.f32 %v312, %v306
        %v314 = vadd.f32 %v313, 1e-05
        %v315 = vrsqrt.pop %v314
        %v316 = vmul.f32 %v308, %v315
        %v318 = vlaneseq
        %v319 = vshrl.u32 %v318, 7
        %v320 = vsub.s32 0, %v319
        %v321 = vrot.slane %v300, %v320
        %v323 = vmul.f32 %v316, %v321
        %v325 = vlaneseq
        %v326 = vshrl.u32 %v325, 7
        %v327 = vsub.s32 0, %v326
        %v328 = vrot.slane %v301, %v327
        %v330 = vadd.f32 %v323, %v328
        %v331 = vpack.c.bf16 %v330, %v330
        %v332 = vld [vmem:[%s4] sm:$0xf]
        %v333 = vld [vmem:[%s4 + $0x4] sm:$0xf]
        %v334 = vld [vmem:[%s4 + $0x8] sm:$0xf]
        %v335 = vld [vmem:[%s4 + $0xc] sm:$0xf]
        %v340 = vunpack.c.l.b16 %v332
        %v341 = vunpack.c.l.b16 %v333
        %v342 = vunpack.c.l.b16 %v334
        %v343 = vunpack.c.l.b16 %v335
        %v344 = vpack.c.b16 %v341, %v340
        %v345 = vpack.c.b16 %v343, %v342
        %v349 = vsel %vm302, %v331, 0
        %351 = vmatprep.subr.bf16.mxu0 0
        %352 = vmatpush1.bf16.msra.mxu0 %v344
        %353 = vmatprep.subr.bf16.mxu0 0
        %354 = vmatpush1.bf16.msra.mxu0 %v345
        %355 = vmatprep.subr.bf16.mxu0 0
        %356 = vmatpush1.bf16.msra.mxu0 0
        %357 = vmatprep.subr.bf16.mxu0 0
        %358 = vmatpush1.bf16.msra.mxu0 0
        %359 = vmatprep.subr.bf16.mxu0 0
        %360 = vmatpush1.bf16.msra.mxu0 0
        %361 = vmatprep.subr.bf16.mxu0 0
        %362 = vmatpush1.bf16.msra.mxu0 0
        %363 = vmatprep.subr.bf16.mxu0 0
        %364 = vmatpush1.bf16.msra.mxu0 0
        %365 = vmatprep.subr.bf16.mxu0 0
        %366 = vmatpush1.bf16.msra.mxu0 0
        %367 = vmatprep.subr.bf16.mxu0 0
        %368 = vmatpush1.bf16.msra.mxu0 0
        %369 = vmatprep.subr.bf16.mxu0 0
        %370 = vmatpush1.bf16.msra.mxu0 0
        %371 = vmatprep.subr.bf16.mxu0 0
        %372 = vmatpush1.bf16.msra.mxu0 0
        %373 = vmatprep.subr.bf16.mxu0 0
        %374 = vmatpush1.bf16.msra.mxu0 0
        %375 = vmatprep.subr.bf16.mxu0 0
        %376 = vmatpush1.bf16.msra.mxu0 0
        %377 = vmatprep.subr.bf16.mxu0 0
        %378 = vmatpush1.bf16.msra.mxu0 0
        %379 = vmatprep.subr.bf16.mxu0 0
        %380 = vmatpush1.bf16.msra.mxu0 0
        %381 = vmatprep.subr.bf16.mxu0 0
        %382 = vmatpush1.bf16.msra.mxu0 0
        %383 = vmatprep.mubr.bf16.mxu0 0
        %384 = vmatmul.mubr.bf16.gmra.mrb[0].mxu0 %v349
        %v385 = vpop.f32.mrb[0].mxu0
        %v386 = vadd.f32 0.0, %v385
        %v387 = vpop.f32.mrb[0].mxu0
        %v388 = vpop.f32.mrb[0].mxu0
        %v389 = vpop.f32.mrb[0].mxu0
        %390 = vdwg.mxu0
        %v391 = vpack.c.bf16 %v386, %v386
        %vm392 = vcmask 257024
        %393 = vst.msk [vmem:[#allocation2] sm:$0xf] %vm392, %v391
        %v395 = vunpack.c.l.b16 %v391
        %v396 = vpack.c.b16 %v395, %v395
        %397 = vrot.lane.b32.xlu0 %v396, 96
        %v398 = vpop.permute.xlu0 %397
        %400 = vst.msk [vmem:[#allocation3] sm:$0xf] %vm392, %v398
      $region52: #{block_forward.2} parent=47 // pred_fallthru
        _
      %s401 = smul.u32 %s23, 8
      %s402 = scalar_lea.vmem %s286, %s401
      %v403 = vld [vmem:[%s402] sm:$0xff]
      %v404 = vld [vmem:[%s1] sm:$0x1]
      %v405 = vld [vmem:[%s2] sm:$0x1]
      %vm406 = vcmask 261120
      %v407 = vsel %vm406, %v403, 0.0
      %408 = vadd.xlane.f32.xlu0 %v407
      %v409 = vpop.xlane.xlu0 %408
      %v410 = vrcp.pop 32.0
      %v411 = vmul.f32 %v409, %v410
      %v412 = vsub.f32 %v403, %v411
      %v413 = vmul.f32 %v412, %v412
      %v414 = vsel %vm406, %v413, 0.0
      %415 = vadd.xlane.f32.xlu0 %v414
      %v416 = vpop.xlane.xlu0 %415
      %v417 = vmul.f32 %v416, %v410
      %v418 = vadd.f32 %v417, 1e-05
      %v419 = vrsqrt.pop %v418
      %v420 = vmul.f32 %v412, %v419
      %v422 = vlaneseq
      %v423 = vshrl.u32 %v422, 7
      %v424 = vsub.s32 0, %v423
      %v425 = vrot.slane %v404, %v424
      %v427 = vmul.f32 %v420, %v425
      %v429 = vlaneseq
      %v430 = vshrl.u32 %v429, 7
      %v431 = vsub.s32 0, %v430
      %v432 = vrot.slane %v405, %v431
      %v434 = vadd.f32 %v427, %v432
      %v435 = vpack.c.bf16 %v434, %v434
      %v436 = vld [vmem:[%s3] sm:$0xf]
      %v437 = vld [vmem:[%s3 + $0x4] sm:$0xf]
      %v438 = vld [vmem:[%s3 + $0x8] sm:$0xf]
      %v439 = vld [vmem:[%s3 + $0xc] sm:$0xf]
      %v444 = vunpack.c.l.b16 %v436
      %v445 = vunpack.c.l.b16 %v437
      %v446 = vunpack.c.l.b16 %v438
      %v447 = vunpack.c.l.b16 %v439
      %v448 = vpack.c.b16 %v445, %v444
      %v449 = vpack.c.b16 %v447, %v446
      %v453 = vsel %vm406, %v435, 0
      %455 = vmatprep.subr.bf16.mxu0 0
      %456 = vmatpush1.bf16.msra.mxu0 %v448
      %457 = vmatprep.subr.bf16.mxu0 0
      %458 = vmatpush1.bf16.msra.mxu0 %v449
      %459 = vmatprep.subr.bf16.mxu0 0
      %460 = vmatpush1.bf16.msra.mxu0 0
      %461 = vmatprep.subr.bf16.mxu0 0
      %462 = vmatpush1.bf16.msra.mxu0 0
      %463 = vmatprep.subr.bf16.mxu0 0
      %464 = vmatpush1.bf16.msra.mxu0 0
      %465 = vmatprep.subr.bf16.mxu0 0
      %466 = vmatpush1.bf16.msra.mxu0 0
      %467 = vmatprep.subr.bf16.mxu0 0
      %468 = vmatpush1.bf16.msra.mxu0 0
      %469 = vmatprep.subr.bf16.mxu0 0
      %470 = vmatpush1.bf16.msra.mxu0 0
      %471 = vmatprep.subr.bf16.mxu0 0
      %472 = vmatpush1.bf16.msra.mxu0 0
      %473 = vmatprep.subr.bf16.mxu0 0
      %474 = vmatpush1.bf16.msra.mxu0 0
      %475 = vmatprep.subr.bf16.mxu0 0
      %476 = vmatpush1.bf16.msra.mxu0 0
      %477 = vmatprep.subr.bf16.mxu0 0
      %478 = vmatpush1.bf16.msra.mxu0 0
      %479 = vmatprep.subr.bf16.mxu0 0
      %480 = vmatpush1.bf16.msra.mxu0 0
      %481 = vmatprep.subr.bf16.mxu0 0
      %482 = vmatpush1.bf16.msra.mxu0 0
      %483 = vmatprep.subr.bf16.mxu0 0
      %484 = vmatpush1.bf16.msra.mxu0 0
      %485 = vmatprep.subr.bf16.mxu0 0
      %486 = vmatpush1.bf16.msra.mxu0 0
      %487 = vmatprep.mubr.bf16.mxu0 0
      %488 = vmatmul.mubr.bf16.gmra.mrb[0].mxu0 %v453
      %v489 = vpop.f32.mrb[0].mxu0
      %v490 = vadd.f32 0.0, %v489
      %v491 = vpop.f32.mrb[0].mxu0
      %v492 = vpop.f32.mrb[0].mxu0
      %v493 = vpop.f32.mrb[0].mxu0
      %494 = vdwg.mxu0
      %v495 = vlaneseq
      %v496 = vshrl.u32 %v495, 7
      %v497 = vstv %s401
      %v498 = vadd.s32 %v497, %v496
      %v499 = vlaneseq
      %v500 = vand.u32 %v499, 127
      %vm501 = vcmp.ge.s32.totalorder %v498, %v500
      %v502 = vsel %vm501, 0.0, -1e+30
      %v503 = vpack.c.bf16 %v490, %v490
      %v504 = vld [vmem:[#allocation2] sm:$0xf]
      %vm505 = vcmask 64512
      %v507 = vsel %vm505, %v503, 0
      %v510 = vsel %vm505, %v504, 0
      %512 = vmatprep.subr.bf16.mxu0 0
      %513 = vmatpush1.bf16.xpose.msra.mxu0 %v510
      %514 = vmatprep.subr.bf16.mxu0 0
      %515 = vmatpush1.bf16.xpose.msra.mxu0 0
      %516 = vmatprep.subr.bf16.mxu0 0
      %517 = vmatpush1.bf16.xpose.msra.mxu0 0
      %518 = vmatprep.subr.bf16.mxu0 0
      %519 = vmatpush1.bf16.xpose.msra.mxu0 0
      %520 = vmatprep.subr.bf16.mxu0 0
      %521 = vmatpush1.bf16.xpose.msra.mxu0 0
      %522 = vmatprep.subr.bf16.mxu0 0
      %523 = vmatpush1.bf16.xpose.msra.mxu0 0
      %524 = vmatprep.subr.bf16.mxu0 0
      %525 = vmatpush1.bf16.xpose.msra.mxu0 0
      %526 = vmatprep.subr.bf16.mxu0 0
      %527 = vmatpush1.bf16.xpose.msra.mxu0 0
      %528 = vmatprep.subr.bf16.mxu0 0
      %529 = vmatpush1.bf16.xpose.msra.mxu0 0
      %530 = vmatprep.subr.bf16.mxu0 0
      %531 = vmatpush1.bf16.xpose.msra.mxu0 0
      %532 = vmatprep.subr.bf16.mxu0 0
      %533 = vmatpush1.bf16.xpose.msra.mxu0 0
      %534 = vmatprep.subr.bf16.mxu0 0
      %535 = vmatpush1.bf16.xpose.msra.mxu0 0
      %536 = vmatprep.subr.bf16.mxu0 0
      %537 = vmatpush1.bf16.xpose.msra.mxu0 0
      %538 = vmatprep.subr.bf16.mxu0 0
      %539 = vmatpush1.bf16.xpose.msra.mxu0 0
      %540 = vmatprep.subr.bf16.mxu0 0
      %541 = vmatpush1.bf16.xpose.msra.mxu0 0
      %542 = vmatprep.subr.bf16.mxu0 0
      %543 = vmatpush1.bf16.xpose.msra.mxu0 0
      %544 = vmatprep.mubr.bf16.mxu0 0
      %545 = vmatmul.mubr.bf16.gmra.mrb[0].mxu0 %v507
      %v546 = vpop.f32.mrb[0].mxu0
      %v547 = vadd.f32 0.0, %v546
      %v548 = vpop.f32.mrb[0].mxu0
      %v549 = vpop.f32.mrb[0].mxu0
      %v550 = vpop.f32.mrb[0].mxu0
      %551 = vdwg.mxu0
      %v552 = vmul.f32 %v547, 0.17677669
      %v553 = vadd.f32 %v552, %v502
      %v554 = vsel %vm505, %v553, -inf
      %555 = vmax.xlane.f32.xlu0 %v554
      %v556 = vpop.xlane.xlu0 %555
      %v557 = vsub.f32 %v553, %v556
      %v558 = vmul.f32 %v557, 1.442695
      %v559 = vpow.pop %v558
      %v560 = vsel %vm505, %v559, 0.0
      %561 = vadd.xlane.f32.xlu0 %v560
      %v562 = vpop.xlane.xlu0 %561
      %v563 = vrcp.pop %v562
      %v564 = vmul.f32 %v559, %v563
      %v565 = vpack.c.bf16 %v564, %v564
      %v566 = vld [vmem:[#allocation3] sm:$0xf]
      %v568 = vsel %vm505, %v565, 0
      %vm570 = vcmask 1043456
      %v572 = vsel %vm570, %v566, 0
      %574 = vmatprep.subr.bf16.mxu0 0
      %575 = vmatpush1.bf16.msra.mxu0 %v572
      %576 = vmatprep.subr.bf16.mxu0 0
      %577 = vmatpush1.bf16.msra.mxu0 0
      %578 = vmatprep.subr.bf16.mxu0 0
      %579 = vmatpush1.bf16.msra.mxu0 0
      %580 = vmatprep.subr.bf16.mxu0 0
      %581 = vmatpush1.bf16.msra.mxu0 0
      %582 = vmatprep.subr.bf16.mxu0 0
      %583 = vmatpush1.bf16.msra.mxu0 0
      %584 = vmatprep.subr.bf16.mxu0 0
      %585 = vmatpush1.bf16.msra.mxu0 0
      %586 = vmatprep.subr.bf16.mxu0 0
      %587 = vmatpush1.bf16.msra.mxu0 0
      %588 = vmatprep.subr.bf16.mxu0 0
      %589 = vmatpush1.bf16.msra.mxu0 0
      %590 = vmatprep.subr.bf16.mxu0 0
      %591 = vmatpush1.bf16.msra.mxu0 0
      %592 = vmatprep.subr.bf16.mxu0 0
      %593 = vmatpush1.bf16.msra.mxu0 0
      %594 = vmatprep.subr.bf16.mxu0 0
      %595 = vmatpush1.bf16.msra.mxu0 0
      %596 = vmatprep.subr.bf16.mxu0 0
      %597 = vmatpush1.bf16.msra.mxu0 0
      %598 = vmatprep.subr.bf16.mxu0 0
      %599 = vmatpush1.bf16.msra.mxu0 0
      %600 = vmatprep.subr.bf16.mxu0 0
      %601 = vmatpush1.bf16.msra.mxu0 0
      %602 = vmatprep.subr.bf16.mxu0 0
      %603 = vmatpush1.bf16.msra.mxu0 0
      %604 = vmatprep.subr.bf16.mxu0 0
      %605 = vmatpush1.bf16.msra.mxu0 0
      %606 = vmatprep.mubr.bf16.mxu0 0
      %607 = vmatmul.mubr.bf16.gmra.mrb[0].mxu0 %v568
      %v608 = vpop.f32.mrb[0].mxu0
      %v609 = vadd.f32 0.0, %v608
      %v610 = vpop.f32.mrb[0].mxu0
      %v611 = vpop.f32.mrb[0].mxu0
      %v612 = vpop.f32.mrb[0].mxu0
      %613 = vdwg.mxu0
      %v614 = vpack.c.bf16 %v609, %v609
      %vm615 = vcmask 60416
      %616 = vst.msk [vmem:[#allocation4] sm:$0xf] %vm615, %v614
      %v617 = vld [vmem:[#allocation2] sm:$0xf]
      %619 = vrot.lane.b32.xlu0 %v503, 120
      %v620 = vpop.permute.xlu0 %619
      %v622 = vunpack.c.l.b16 %v617
      %v623 = vpack.c.b16 %v622, %v622
      %624 = vrot.lane.b32.xlu0 %v623, 120
      %v625 = vpop.permute.xlu0 %624
      %v627 = vsel %vm505, %v620, 0
      %v630 = vsel %vm505, %v625, 0
      %632 = vmatprep.subr.bf16.mxu0 0
      %633 = vmatpush1.bf16.xpose.msra.mxu0 %v630
      %634 = vmatprep.subr.bf16.mxu0 0
      %635 = vmatpush1.bf16.xpose.msra.mxu0 0
      %636 = vmatprep.subr.bf16.mxu0 0
      %637 = vmatpush1.bf16.xpose.msra.mxu0 0
      %638 = vmatprep.subr.bf16.mxu0 0
      %639 = vmatpush1.bf16.xpose.msra.mxu0 0
      %640 = vmatprep.subr.bf16.mxu0 0
      %641 = vmatpush1.bf16.xpose.msra.mxu0 0
      %642 = vmatprep.subr.bf16.mxu0 0
      %643 = vmatpush1.bf16.xpose.msra.mxu0 0
      %644 = vmatprep.subr.bf16.mxu0 0
      %645 = vmatpush1.bf16.xpose.msra.mxu0 0
      %646 = vmatprep.subr.bf16.mxu0 0
      %647 = vmatpush1.bf16.xpose.msra.mxu0 0
      %648 = vmatprep.subr.bf16.mxu0 0
      %649 = vmatpush1.bf16.xpose.msra.mxu0 0
      %650 = vmatprep.subr.bf16.mxu0 0
      %651 = vmatpush1.bf16.xpose.msra.mxu0 0
      %652 = vmatprep.subr.bf16.mxu0 0
      %653 = vmatpush1.bf16.xpose.msra.mxu0 0
      %654 = vmatprep.subr.bf16.mxu0 0
      %655 = vmatpush1.bf16.xpose.msra.mxu0 0
      %656 = vmatprep.subr.bf16.mxu0 0
      %657 = vmatpush1.bf16.xpose.msra.mxu0 0
      %658 = vmatprep.subr.bf16.mxu0 0
      %659 = vmatpush1.bf16.xpose.msra.mxu0 0
      %660 = vmatprep.subr.bf16.mxu0 0
      %661 = vmatpush1.bf16.xpose.msra.mxu0 0
      %662 = vmatprep.subr.bf16.mxu0 0
      %663 = vmatpush1.bf16.xpose.msra.mxu0 0
      %664 = vmatprep.mubr.bf16.mxu0 0
      %665 = vmatmul.mubr.bf16.gmra.mrb[0].mxu0 %v627
      %v666 = vpop.f32.mrb[0].mxu0
      %v667 = vadd.f32 0.0, %v666
      %v668 = vpop.f32.mrb[0].mxu0
      %v669 = vpop.f32.mrb[0].mxu0
      %v670 = vpop.f32.mrb[0].mxu0
      %671 = vdwg.mxu0
      %v672 = vmul.f32 %v667, 0.17677669
      %v673 = vadd.f32 %v672, %v502
      %v674 = vsel %vm505, %v673, -inf
      %675 = vmax.xlane.f32.xlu0 %v674
      %v676 = vpop.xlane.xlu0 %675
      %v677 = vsub.f32 %v673, %v676
      %v678 = vmul.f32 %v677, 1.442695
      %v679 = vpow.pop %v678
      %v680 = vsel %vm505, %v679, 0.0
      %681 = vadd.xlane.f32.xlu0 %v680
      %v682 = vpop.xlane.xlu0 %681
      %v683 = vrcp.pop %v682
      %v684 = vmul.f32 %v679, %v683
      %v685 = vpack.c.bf16 %v684, %v684
      %v686 = vld [vmem:[#allocation3] sm:$0xf]
      %v688 = vunpack.c.l.b16 %v686
      %v689 = vpack.c.b16 %v688, %v688
      %690 = vrot.lane.b32.xlu0 %v689, 120
      %v691 = vpop.permute.xlu0 %690
      %v693 = vsel %vm505, %v685, 0
      %v696 = vsel %vm570, %v691, 0
      %698 = vmatprep.subr.bf16.mxu0 0
      %699 = vmatpush1.bf16.msra.mxu0 %v696
      %700 = vmatprep.subr.bf16.mxu0 0
      %701 = vmatpush1.bf16.msra.mxu0 0
      %702 = vmatprep.subr.bf16.mxu0 0
      %703 = vmatpush1.bf16.msra.mxu0 0
      %704 = vmatprep.subr.bf16.mxu0 0
      %705 = vmatpush1.bf16.msra.mxu0 0
      %706 = vmatprep.subr.bf16.mxu0 0
      %707 = vmatpush1.bf16.msra.mxu0 0
      %708 = vmatprep.subr.bf16.mxu0 0
      %709 = vmatpush1.bf16.msra.mxu0 0
      %710 = vmatprep.subr.bf16.mxu0 0
      %711 = vmatpush1.bf16.msra.mxu0 0
      %712 = vmatprep.subr.bf16.mxu0 0
      %713 = vmatpush1.bf16.msra.mxu0 0
      %714 = vmatprep.subr.bf16.mxu0 0
      %715 = vmatpush1.bf16.msra.mxu0 0
      %716 = vmatprep.subr.bf16.mxu0 0
      %717 = vmatpush1.bf16.msra.mxu0 0
      %718 = vmatprep.subr.bf16.mxu0 0
      %719 = vmatpush1.bf16.msra.mxu0 0
      %720 = vmatprep.subr.bf16.mxu0 0
      %721 = vmatpush1.bf16.msra.mxu0 0
      %722 = vmatprep.subr.bf16.mxu0 0
      %723 = vmatpush1.bf16.msra.mxu0 0
      %724 = vmatprep.subr.bf16.mxu0 0
      %725 = vmatpush1.bf16.msra.mxu0 0
      %726 = vmatprep.subr.bf16.mxu0 0
      %727 = vmatpush1.bf16.msra.mxu0 0
      %728 = vmatprep.subr.bf16.mxu0 0
      %729 = vmatpush1.bf16.msra.mxu0 0
      %730 = vmatprep.mubr.bf16.mxu0 0
      %731 = vmatmul.mubr.bf16.gmra.mrb[0].mxu0 %v693
      %v732 = vpop.f32.mrb[0].mxu0
      %v733 = vadd.f32 0.0, %v732
      %v734 = vpop.f32.mrb[0].mxu0
      %v735 = vpop.f32.mrb[0].mxu0
      %v736 = vpop.f32.mrb[0].mxu0
      %737 = vdwg.mxu0
      %v738 = vpack.c.bf16 %v733, %v733
      %v740 = vunpack.c.l.b16 %v738
      %v741 = vpack.c.b16 %v740, %v740
      %742 = vrot.lane.b32.xlu0 %v741, 8
      %v743 = vpop.permute.xlu0 %742
      %vm745 = vcmask 126016
      %746 = vst.msk [vmem:[#allocation4] sm:$0xf] %vm745, %v743
      %v747 = vld [vmem:[#allocation2] sm:$0xf]
      %748 = vrot.lane.b32.xlu0 %v503, 112
      %v749 = vpop.permute.xlu0 %748
      %v751 = vunpack.c.l.b16 %v747
      %v752 = vpack.c.b16 %v751, %v751
      %753 = vrot.lane.b32.xlu0 %v752, 112
      %v754 = vpop.permute.xlu0 %753
      %v756 = vsel %vm505, %v749, 0
      %v759 = vsel %vm505, %v754, 0
      %761 = vmatprep.subr.bf16.mxu0 0
      %762 = vmatpush1.bf16.xpose.msra.mxu0 %v759
      %763 = vmatprep.subr.bf16.mxu0 0
      %764 = vmatpush1.bf16.xpose.msra.mxu0 0
      %765 = vmatprep.subr.bf16.mxu0 0
      %766 = vmatpush1.bf16.xpose.msra.mxu0 0
      %767 = vmatprep.subr.bf16.mxu0 0
      %768 = vmatpush1.bf16.xpose.msra.mxu0 0
      %769 = vmatprep.subr.bf16.mxu0 0
      %770 = vmatpush1.bf16.xpose.msra.mxu0 0
      %771 = vmatprep.subr.bf16.mxu0 0
      %772 = vmatpush1.bf16.xpose.msra.mxu0 0
      %773 = vmatprep.subr.bf16.mxu0 0
      %774 = vmatpush1.bf16.xpose.msra.mxu0 0
      %775 = vmatprep.subr.bf16.mxu0 0
      %776 = vmatpush1.bf16.xpose.msra.mxu0 0
      %777 = vmatprep.subr.bf16.mxu0 0
      %778 = vmatpush1.bf16.xpose.msra.mxu0 0
      %779 = vmatprep.subr.bf16.mxu0 0
      %780 = vmatpush1.bf16.xpose.msra.mxu0 0
      %781 = vmatprep.subr.bf16.mxu0 0
      %782 = vmatpush1.bf16.xpose.msra.mxu0 0
      %783 = vmatprep.subr.bf16.mxu0 0
      %784 = vmatpush1.bf16.xpose.msra.mxu0 0
      %785 = vmatprep.subr.bf16.mxu0 0
      %786 = vmatpush1.bf16.xpose.msra.mxu0 0
      %787 = vmatprep.subr.bf16.mxu0 0
      %788 = vmatpush1.bf16.xpose.msra.mxu0 0
      %789 = vmatprep.subr.bf16.mxu0 0
      %790 = vmatpush1.bf16.xpose.msra.mxu0 0
      %791 = vmatprep.subr.bf16.mxu0 0
      %792 = vmatpush1.bf16.xpose.msra.mxu0 0
      %793 = vmatprep.mubr.bf16.mxu0 0
      %794 = vmatmul.mubr.bf16.gmra.mrb[0].mxu0 %v756
      %v795 = vpop.f32.mrb[0].mxu0
      %v796 = vadd.f32 0.0, %v795
      %v797 = vpop.f32.mrb[0].mxu0
      %v798 = vpop.f32.mrb[0].mxu0
      %v799 = vpop.f32.mrb[0].mxu0
      %800 = vdwg.mxu0
      %v801 = vmul.f32 %v796, 0.17677669
      %v802 = vadd.f32 %v801, %v502
      %v803 = vsel %vm505, %v802, -inf
      %804 = vmax.xlane.f32.xlu0 %v803
      %v805 = vpop.xlane.xlu0 %804
      %v806 = vsub.f32 %v802, %v805
      %v807 = vmul.f32 %v806, 1.442695
      %v808 = vpow.pop %v807
      %v809 = vsel %vm505, %v808, 0.0
      %810 = vadd.xlane.f32.xlu0 %v809
      %v811 = vpop.xlane.xlu0 %810
      %v812 = vrcp.pop %v811
      %v813 = vmul.f32 %v808, %v812
      %v814 = vpack.c.bf16 %v813, %v813
      %v815 = vld [vmem:[#allocation3] sm:$0xf]
      %v817 = vunpack.c.l.b16 %v815
      %v818 = vpack.c.b16 %v817, %v817
      %819 = vrot.lane.b32.xlu0 %v818, 112
      %v820 = vpop.permute.xlu0 %819
      %v822 = vsel %vm505, %v814, 0
      %v825 = vsel %vm570, %v820, 0
      %827 = vmatprep.subr.bf16.mxu0 0
      %828 = vmatpush1.bf16.msra.mxu0 %v825
      %829 = vmatprep.subr.bf16.mxu0 0
      %830 = vmatpush1.bf16.msra.mxu0 0
      %831 = vmatprep.subr.bf16.mxu0 0
      %832 = vmatpush1.bf16.msra.mxu0 0
      %833 = vmatprep.subr.bf16.mxu0 0
      %834 = vmatpush1.bf16.msra.mxu0 0
      %835 = vmatprep.subr.bf16.mxu0 0
      %836 = vmatpush1.bf16.msra.mxu0 0
      %837 = vmatprep.subr.bf16.mxu0 0
      %838 = vmatpush1.bf16.msra.mxu0 0
      %839 = vmatprep.subr.bf16.mxu0 0
      %840 = vmatpush1.bf16.msra.mxu0 0
      %841 = vmatprep.subr.bf16.mxu0 0
      %842 = vmatpush1.bf16.msra.mxu0 0
      %843 = vmatprep.subr.bf16.mxu0 0
      %844 = vmatpush1.bf16.msra.mxu0 0
      %845 = vmatprep.subr.bf16.mxu0 0
      %846 = vmatpush1.bf16.msra.mxu0 0
      %847 = vmatprep.subr.bf16.mxu0 0
      %848 = vmatpush1.bf16.msra.mxu0 0
      %849 = vmatprep.subr.bf16.mxu0 0
      %850 = vmatpush1.bf16.msra.mxu0 0
      %851 = vmatprep.subr.bf16.mxu0 0
      %852 = vmatpush1.bf16.msra.mxu0 0
      %853 = vmatprep.subr.bf16.mxu0 0
      %854 = vmatpush1.bf16.msra.mxu0 0
      %855 = vmatprep.subr.bf16.mxu0 0
      %856 = vmatpush1.bf16.msra.mxu0 0
      %857 = vmatprep.subr.bf16.mxu0 0
      %858 = vmatpush1.bf16.msra.mxu0 0
      %859 = vmatprep.mubr.bf16.mxu0 0
      %860 = vmatmul.mubr.bf16.gmra.mrb[0].mxu0 %v822
      %v861 = vpop.f32.mrb[0].mxu0
      %v862 = vadd.f32 0.0, %v861
      %v863 = vpop.f32.mrb[0].mxu0
      %v864 = vpop.f32.mrb[0].mxu0
      %v865 = vpop.f32.mrb[0].mxu0
      %866 = vdwg.mxu0
      %v867 = vpack.c.bf16 %v862, %v862
      %v869 = vunpack.c.l.b16 %v867
      %v870 = vpack.c.b16 %v869, %v869
      %871 = vrot.lane.b32.xlu0 %v870, 16
      %v872 = vpop.permute.xlu0 %871
      %vm874 = vcmask 191616
      %875 = vst.msk [vmem:[#allocation4] sm:$0xf] %vm874, %v872
      %v876 = vld [vmem:[#allocation2] sm:$0xf]
      %877 = vrot.lane.b32.xlu0 %v503, 104
      %v878 = vpop.permute.xlu0 %877
      %v880 = vunpack.c.l.b16 %v876
      %v881 = vpack.c.b16 %v880, %v880
      %882 = vrot.lane.b32.xlu0 %v881, 104
      %v883 = vpop.permute.xlu0 %882
      %v885 = vsel %vm505, %v878, 0
      %v888 = vsel %vm505, %v883, 0
      %890 = vmatprep.subr.bf16.mxu0 0
      %891 = vmatpush1.bf16.xpose.msra.mxu0 %v888
      %892 = vmatprep.subr.bf16.mxu0 0
      %893 = vmatpush1.bf16.xpose.msra.mxu0 0
      %894 = vmatprep.subr.bf16.mxu0 0
      %895 = vmatpush1.bf16.xpose.msra.mxu0 0
      %896 = vmatprep.subr.bf16.mxu0 0
      %897 = vmatpush1.bf16.xpose.msra.mxu0 0
      %898 = vmatprep.subr.bf16.mxu0 0
      %899 = vmatpush1.bf16.xpose.msra.mxu0 0
      %900 = vmatprep.subr.bf16.mxu0 0
      %901 = vmatpush1.bf16.xpose.msra.mxu0 0
      %902 = vmatprep.subr.bf16.mxu0 0
      %903 = vmatpush1.bf16.xpose.msra.mxu0 0
      %904 = vmatprep.subr.bf16.mxu0 0
      %905 = vmatpush1.bf16.xpose.msra.mxu0 0
      %906 = vmatprep.subr.bf16.mxu0 0
      %907 = vmatpush1.bf16.xpose.msra.mxu0 0
      %908 = vmatprep.subr.bf16.mxu0 0
      %909 = vmatpush1.bf16.xpose.msra.mxu0 0
      %910 = vmatprep.subr.bf16.mxu0 0
      %911 = vmatpush1.bf16.xpose.msra.mxu0 0
      %912 = vmatprep.subr.bf16.mxu0 0
      %913 = vmatpush1.bf16.xpose.msra.mxu0 0
      %914 = vmatprep.subr.bf16.mxu0 0
      %915 = vmatpush1.bf16.xpose.msra.mxu0 0
      %916 = vmatprep.subr.bf16.mxu0 0
      %917 = vmatpush1.bf16.xpose.msra.mxu0 0
      %918 = vmatprep.subr.bf16.mxu0 0
      %919 = vmatpush1.bf16.xpose.msra.mxu0 0
      %920 = vmatprep.subr.bf16.mxu0 0
      %921 = vmatpush1.bf16.xpose.msra.mxu0 0
      %922 = vmatprep.mubr.bf16.mxu0 0
      %923 = vmatmul.mubr.bf16.gmra.mrb[0].mxu0 %v885
      %v924 = vpop.f32.mrb[0].mxu0
      %v925 = vadd.f32 0.0, %v924
      %v926 = vpop.f32.mrb[0].mxu0
      %v927 = vpop.f32.mrb[0].mxu0
      %v928 = vpop.f32.mrb[0].mxu0
      %929 = vdwg.mxu0
      %v930 = vmul.f32 %v925, 0.17677669
      %v931 = vadd.f32 %v930, %v502
      %v932 = vsel %vm505, %v931, -inf
      %933 = vmax.xlane.f32.xlu0 %v932
      %v934 = vpop.xlane.xlu0 %933
      %v935 = vsub.f32 %v931, %v934
      %v936 = vmul.f32 %v935, 1.442695
      %v937 = vpow.pop %v936
      %v938 = vsel %vm505, %v937, 0.0
      %939 = vadd.xlane.f32.xlu0 %v938
      %v940 = vpop.xlane.xlu0 %939
      %v941 = vrcp.pop %v940
      %v942 = vmul.f32 %v937, %v941
      %v943 = vpack.c.bf16 %v942, %v942
      %v944 = vld [vmem:[#allocation3] sm:$0xf]
      %v946 = vunpack.c.l.b16 %v944
      %v947 = vpack.c.b16 %v946, %v946
      %948 = vrot.lane.b32.xlu0 %v947, 104
      %v949 = vpop.permute.xlu0 %948
      %v951 = vsel %vm505, %v943, 0
      %v954 = vsel %vm570, %v949, 0
      %956 = vmatprep.subr.bf16.mxu0 0
      %957 = vmatpush1.bf16.msra.mxu0 %v954
      %958 = vmatprep.subr.bf16.mxu0 0
      %959 = vmatpush1.bf16.msra.mxu0 0
      %960 = vmatprep.subr.bf16.mxu0 0
      %961 = vmatpush1.bf16.msra.mxu0 0
      %962 = vmatprep.subr.bf16.mxu0 0
      %963 = vmatpush1.bf16.msra.mxu0 0
      %964 = vmatprep.subr.bf16.mxu0 0
      %965 = vmatpush1.bf16.msra.mxu0 0
      %966 = vmatprep.subr.bf16.mxu0 0
      %967 = vmatpush1.bf16.msra.mxu0 0
      %968 = vmatprep.subr.bf16.mxu0 0
      %969 = vmatpush1.bf16.msra.mxu0 0
      %970 = vmatprep.subr.bf16.mxu0 0
      %971 = vmatpush1.bf16.msra.mxu0 0
      %972 = vmatprep.subr.bf16.mxu0 0
      %973 = vmatpush1.bf16.msra.mxu0 0
      %974 = vmatprep.subr.bf16.mxu0 0
      %975 = vmatpush1.bf16.msra.mxu0 0
      %976 = vmatprep.subr.bf16.mxu0 0
      %977 = vmatpush1.bf16.msra.mxu0 0
      %978 = vmatprep.subr.bf16.mxu0 0
      %979 = vmatpush1.bf16.msra.mxu0 0
      %980 = vmatprep.subr.bf16.mxu0 0
      %981 = vmatpush1.bf16.msra.mxu0 0
      %982 = vmatprep.subr.bf16.mxu0 0
      %983 = vmatpush1.bf16.msra.mxu0 0
      %984 = vmatprep.subr.bf16.mxu0 0
      %985 = vmatpush1.bf16.msra.mxu0 0
      %986 = vmatprep.subr.bf16.mxu0 0
      %987 = vmatpush1.bf16.msra.mxu0 0
      %988 = vmatprep.mubr.bf16.mxu0 0
      %989 = vmatmul.mubr.bf16.gmra.mrb[0].mxu0 %v951
      %v990 = vpop.f32.mrb[0].mxu0
      %v991 = vadd.f32 0.0, %v990
      %v992 = vpop.f32.mrb[0].mxu0
      %v993 = vpop.f32.mrb[0].mxu0
      %v994 = vpop.f32.mrb[0].mxu0
      %995 = vdwg.mxu0
      %v996 = vpack.c.bf16 %v991, %v991
      %v998 = vunpack.c.l.b16 %v996
      %v999 = vpack.c.b16 %v998, %v998
      %1000 = vrot.lane.b32.xlu0 %v999, 24
      %v1001 = vpop.permute.xlu0 %1000
      %vm1003 = vcmask 257216
      %1004 = vst.msk [vmem:[#allocation4] sm:$0xf] %vm1003, %v1001
      %v1005 = vld [vmem:[#allocation4] sm:$0xf]
      %v1006 = vld [vmem:[%s5] sm:$0xf]
      %v1007 = vld [vmem:[%s5 + $0x4] sm:$0xf]
      %v1008 = vld [vmem:[%s5 + $0x8] sm:$0xf]
      %v1009 = vld [vmem:[%s5 + $0xc] sm:$0xf]
      %v1010 = vld [vmem:[%s6] sm:$0x1]
      %v1012 = vlaneseq
      %v1013 = vshrl.u32 %v1012, 7
      %v1014 = vsub.s32 0, %v1013
      %v1015 = vrot.slane %v1010, %v1014
      %v1021 = vunpack.c.l.b16 %v1006
      %v1022 = vunpack.c.l.b16 %v1007
      %v1023 = vunpack.c.l.b16 %v1008
      %v1024 = vunpack.c.l.b16 %v1009
      %v1025 = vpack.c.b16 %v1022, %v1021
      %v1026 = vpack.c.b16 %v1024, %v1023
      %v1030 = vsel %vm406, %v1005, 0
      %1032 = vmatprep.subr.bf16.mxu0 0
      %1033 = vmatpush1.bf16.msra.mxu0 %v1025
      %1034 = vmatprep.subr.bf16.mxu0 0
      %1035 = vmatpush1.bf16.msra.mxu0 %v1026
      %1036 = vmatprep.subr.bf16.mxu0 0
      %1037 = vmatpush1.bf16.msra.mxu0 0
      %1038 = vmatprep.subr.bf16.mxu0 0
      %1039 = vmatpush1.bf16.msra.mxu0 0
      %1040 = vmatprep.subr.bf16.mxu0 0
      %1041 = vmatpush1.bf16.msra.mxu0 0
      %1042 = vmatprep.subr.bf16.mxu0 0
      %1043 = vmatpush1.bf16.msra.mxu0 0
      %1044 = vmatprep.subr.bf16.mxu0 0
      %1045 = vmatpush1.bf16.msra.mxu0 0
      %1046 = vmatprep.subr.bf16.mxu0 0
      %1047 = vmatpush1.bf16.msra.mxu0 0
      %1048 = vmatprep.subr.bf16.mxu0 0
      %1049 = vmatpush1.bf16.msra.mxu0 0
      %1050 = vmatprep.subr.bf16.mxu0 0
      %1051 = vmatpush1.bf16.msra.mxu0 0
      %1052 = vmatprep.subr.bf16.mxu0 0
      %1053 = vmatpush1.bf16.msra.mxu0 0
      %1054 = vmatprep.subr.bf16.mxu0 0
      %1055 = vmatpush1.bf16.msra.mxu0 0
      %1056 = vmatprep.subr.bf16.mxu0 0
      %1057 = vmatpush1.bf16.msra.mxu0 0
      %1058 = vmatprep.subr.bf16.mxu0 0
      %1059 = vmatpush1.bf16.msra.mxu0 0
      %1060 = vmatprep.subr.bf16.mxu0 0
      %1061 = vmatpush1.bf16.msra.mxu0 0
      %1062 = vmatprep.subr.bf16.mxu0 0
      %1063 = vmatpush1.bf16.msra.mxu0 0
      %1064 = vmatprep.mubr.bf16.mxu0 0
      %1065 = vmatmul.mubr.bf16.gmra.mrb[0].mxu0 %v1030
      %v1066 = vpop.f32.mrb[0].mxu0
      %v1067 = vadd.f32 %v1015, %v1066
      %v1068 = vpop.f32.mrb[0].mxu0
      %v1069 = vpop.f32.mrb[0].mxu0
      %v1070 = vpop.f32.mrb[0].mxu0
      %1071 = vdwg.mxu0
      %v1072 = vadd.f32 %v403, %v1067
      %1073 = vst.msk [vmem:[%s293] sm:$0xff] %vm406, %v1072
      %p1074 = scmp.lt.s32.totalorder %s22, 1
      %s1075 = scalar_select %p1074, %s22, 1
      %p1076 = scmp.lt.s32.totalorder %s23, 0
      %s1077 = scalar_select %p1076, %s23, 0
      %s1078 = sadd.s32 %s1077, %s1075
      %s1079 = smul.addr %s1078, 8
      %s1080 = scalar_lea.vmem %s7, %s1079
      // Predicated region
      $region53: #{block_forward.2} parent=47 // pred_check
        %p1081 = pneg %p202
      $region54: #{block_forward.2} parent=47 // pred_check_branch
        %1083 = sbr.rel (%p1081) target = $region56
      $region55: #{block_forward.2} parent=47 // pred_region
        _
      $region56: #{block_forward.2} parent=47 // pred_fallthru
        _
    $region48: #{block_forward.2} parent=5 // pred_fallthru
      _
    %p1084 = scmp.le.s32.totalorder 2, %s13
    // Predicated region
    $region57: #{block_forward.2} parent=5 // pred_check
      %p1085 = pneg %p1084
    $region58: #{block_forward.2} parent=5 // pred_check_branch
      %1087 = sbr.rel (%p1085) target = $region60
    $region59: #{block_forward.2} parent=5 // pred_region
      %s1088 = ssub.s32 %s13, 2
      // Predicated region
      $region61: #{block_forward.2} parent=59 // pred_check
        %p1089 = pneg %p208
      $region62: #{block_forward.2} parent=59 // pred_check_branch
        %1091 = sbr.rel (%p1089) target = $region64
      $region63: #{block_forward.2} parent=59 // pred_region
        %p1092 = scmp.lt.s32.totalorder %s24, 1
        %s1093 = scalar_select %p1092, %s24, 1
        %p1094 = scmp.lt.s32.totalorder %s25, 0
        %s1095 = scalar_select %p1094, %s25, 0
        %s1096 = sadd.s32 %s1095, %s1093
        %s1097 = smul.addr %s1096, 8
        %s1098 = scalar_lea.vmem %s7, %s1097
      $region64: #{block_forward.2} parent=59 // pred_fallthru
        _
    $region60: #{block_forward.2} parent=5 // pred_fallthru
      _
  $region6: #{block_forward.2} parent=0 // loop_footer
    %s17 = sadd.s32 1, %s13
  $region7: #{block_forward.2} parent=0 // loop_footer_branch
    %12 = sbr.rel target = $region3
  $region8: #{block_forward.2} parent=0 // loop_exit
    _

// kernel: block_forward.3
$region0: #{block_forward.3}
  #allocation0 [shape = 'u32[]', space=smem, size = 0x4, offset = 0x4, fixed_abs, tag = 'smem constant byte address 0x4 - core index']
  #allocation1 [shape = 'u32[144,128]{1,0:T(1,128)}', space=vmem, size = 0x12000, scoped, tag = 'internal scratch']
  #allocation2 [shape = 'bf16[16,32]{1,0:T(16,128)(2,1)}', space=vmem, size = 0x1000, scoped, tag = 'scratch operand']
  #allocation3 [shape = 'f32[16,32]{1,0:T(8,128)}', space=vmem, size = 0x2000, scoped, tag = 'scratch operand']
  %s0 = inlined_call_operand.vmem [shape: f32[16,32], index: 0, kind: input, shape index: {}]
  %s1 = inlined_call_operand.vmem [shape: f32[16,4], index: 1, kind: input, shape index: {}]
  %s2 = inlined_call_operand.vmem [shape: f32[1,32], index: 2, kind: input, shape index: {}]
  %s3 = inlined_call_operand.vmem [shape: f32[1,32], index: 3, kind: input, shape index: {}]
  %s4 = inlined_call_operand.vmem [shape: bf16[4,32,128], index: 4, kind: input, shape index: {}]
  %s5 = inlined_call_operand.vmem [shape: f32[4,1,128], index: 5, kind: input, shape index: {}]
  %s6 = inlined_call_operand.vmem [shape: bf16[4,128,32], index: 6, kind: input, shape index: {}]
  %s7 = inlined_call_operand.vmem [shape: f32[4,1,32], index: 7, kind: input, shape index: {}]
  %s8 = inlined_call_operand.hbm [shape: f32[16,32], index: 8, kind: output, shape index: {}]
  %s9 = sld [smem:[#allocation0]]
  $region73: #{block_forward.3} parent=0
    _
  %s11 = ssub.s32 1, %s9
  %s12 = scalar_select 0, %s11, %s9
  $region1: #{block_forward.3} parent=0
    #allocation4 [shape = 'u8[8192]{0}', space=vmem, size = 0x2000, scoped, tag = 'output window, operand 0, single buffered']
    #allocation5 [shape = 's32[2]{0}', space=sflag, size = 0x8, scoped, tag = 'scoped memory for block_forward.3']
    %13 = vsyncpa [#allocation5], 0
    loop: start=0, step=1, limit=6
    $region2: #{block_forward.3} parent=1 // loop_pre_header
      _
    $region3: #{block_forward.3} parent=1 // loop_header
      %s15 = sphi 0, %s19
      %p16 = scmp.ge.s32.totalorder %s15, 6
      %s22 = sphi 0, %s34
      %s23 = sphi 0, %s30
      %s24 = sphi 0, %s22
      %s25 = sphi 0, %s23
      %s26 = sphi 0, %s24
      %s27 = sphi 0, %s25
      %s37 = sphi 0, %s39
      %s40 = sphi 0, %s37
      %s41 = sphi 0, %s40
      %s57 = sphi 0, %s41
      %s63 = sphi 0, %s65
      %s66 = sphi 0, %s63
      %s67 = sphi 0, %s66
      %s83 = sphi 0, %s67
      %s87 = sphi 0, %s87
      %s89 = sphi 0, %s87
      %s90 = sphi 0, %s89
      %s104 = sphi 0, %s90
      %s108 = sphi 0, %s108
      %s110 = sphi 0, %s108
      %s111 = sphi 0, %s110
      %s125 = sphi 0, %s111
      %s131 = sphi 0, %s133
      %s134 = sphi 0, %s131
      %s135 = sphi 0, %s134
      %s151 = sphi 0, %s135
      %s157 = sphi 0, %s159
      %s160 = sphi 0, %s157
      %s161 = sphi 0, %s160
      %s177 = sphi 0, %s161
      %s183 = sphi 0, %s185
      %s186 = sphi 0, %s183
      %s187 = sphi 0, %s186
      %s203 = sphi 0, %s187
      %s209 = sphi 0, %s211
      %s212 = sphi 0, %s209
      %s213 = sphi 0, %s212
      %s229 = sphi 0, %s213
      %s235 = sphi 0, %s237
      %s238 = sphi 0, %s235
      %s239 = sphi 0, %s238
      %s255 = sphi 0, %s239
    $region4: #{block_forward.3} parent=1 // loop_header_branch
      %18 = sbr.rel (%p16) target = $region8
    $region5: #{block_forward.3} parent=1 // loop_body
      %s20 = ssub.s32 %s15, 1
      %s21 = ssub.s32 %s15, 2
      %s28 = sadd.s32 1, %s23
      %p29 = scmp.ge.s32.totalorder %s28, 4
      %s30 = scalar_select %p29, 0, %s28
      %s31 = sadd.s32 1, %s22
      %s32 = scalar_select %p29, %s31, %s22
      %p33 = scmp.ge.s32.totalorder %s32, 1
      %s34 = scalar_select %p33, 0, %s32
      %s35 = ssub.s32 %s22, %s34
      %p36 = scmp.eq.s32.totalorder %s35, 0
      %s38 = sadd.s32 %s37, 1
      %s39 = scalar_select %p36, %s37, %s38
      %p42 = pneg %p36
      %p43 = scmp.eq.s32.totalorder %s15, 3
      %p44 = por %p42, %p43
      %p45 = scmp.ne.s32.totalorder %s37, %s40
      %p46 = scmp.eq.s32.totalorder %s15, 0
      %p47 = por %p45, %p46
      %p48 = scmp.ne.s32.totalorder %s37, %s40
      %p49 = scmp.eq.s32.totalorder %s20, 3
      %p50 = por %p48, %p49
      %p51 = scmp.ne.s32.totalorder %s40, %s41
      %p52 = scmp.eq.s32.totalorder %s20, 0
      %p53 = por %p51, %p52
      %p54 = scmp.ne.s32.totalorder %s40, %s41
      %p55 = scmp.eq.s32.totalorder %s21, 3
      %p56 = por %p54, %p55
      %p58 = scmp.ne.s32.totalorder %s41, %s57
      %p59 = scmp.eq.s32.totalorder %s21, 0
      %p60 = por %p58, %p59
      %s61 = ssub.s32 %s22, %s34
      %p62 = scmp.eq.s32.totalorder %s61, 0
      %s64 = sadd.s32 %s63, 1
      %s65 = scalar_select %p62, %s63, %s64
      %p68 = pneg %p62
      %p69 = scmp.eq.s32.totalorder %s15, 3
      %p70 = por %p68, %p69
      %p71 = scmp.ne.s32.totalorder %s63, %s66
      %p72 = scmp.eq.s32.totalorder %s15, 0
      %p73 = por %p71, %p72
      %p74 = scmp.ne.s32.totalorder %s63, %s66
      %p75 = scmp.eq.s32.totalorder %s20, 3
      %p76 = por %p74, %p75
      %p77 = scmp.ne.s32.totalorder %s66, %s67
      %p78 = scmp.eq.s32.totalorder %s20, 0
      %p79 = por %p77, %p78
      %p80 = scmp.ne.s32.totalorder %s66, %s67
      %p81 = scmp.eq.s32.totalorder %s21, 3
      %p82 = por %p80, %p81
      %p84 = scmp.ne.s32.totalorder %s67, %s83
      %p85 = scmp.eq.s32.totalorder %s21, 0
      %p86 = por %p84, %p85
      %s88 = sadd.s32 %s87, 1
      %p91 = scmp.eq.s32.totalorder %s15, 3
      %p92 = scmp.ne.s32.totalorder %s87, %s89
      %p93 = scmp.eq.s32.totalorder %s15, 0
      %p94 = por %p92, %p93
      %p95 = scmp.ne.s32.totalorder %s87, %s89
      %p96 = scmp.eq.s32.totalorder %s20, 3
      %p97 = por %p95, %p96
      %p98 = scmp.ne.s32.totalorder %s89, %s90
      %p99 = scmp.eq.s32.totalorder %s20, 0
      %p100 = por %p98, %p99
      %p101 = scmp.ne.s32.totalorder %s89, %s90
      %p102 = scmp.eq.s32.totalorder %s21, 3
      %p103 = por %p101, %p102
      %p105 = scmp.ne.s32.totalorder %s90, %s104
      %p106 = scmp.eq.s32.totalorder %s21, 0
      %p107 = por %p105, %p106
      %s109 = sadd.s32 %s108, 1
      %p112 = scmp.eq.s32.totalorder %s15, 3
      %p113 = scmp.ne.s32.totalorder %s108, %s110
      %p114 = scmp.eq.s32.totalorder %s15, 0
      %p115 = por %p113, %p114
      %p116 = scmp.ne.s32.totalorder %s108, %s110
      %p117 = scmp.eq.s32.totalorder %s20, 3
      %p118 = por %p116, %p117
      %p119 = scmp.ne.s32.totalorder %s110, %s111
      %p120 = scmp.eq.s32.totalorder %s20, 0
      %p121 = por %p119, %p120
      %p122 = scmp.ne.s32.totalorder %s110, %s111
      %p123 = scmp.eq.s32.totalorder %s21, 3
      %p124 = por %p122, %p123
      %p126 = scmp.ne.s32.totalorder %s111, %s125
      %p127 = scmp.eq.s32.totalorder %s21, 0
      %p128 = por %p126, %p127
      %s129 = ssub.s32 %s23, %s30
      %p130 = scmp.eq.s32.totalorder %s129, 0
      %s132 = sadd.s32 %s131, 1
      %s133 = scalar_select %p130, %s131, %s132
      %p136 = pneg %p130
      %p137 = scmp.eq.s32.totalorder %s15, 3
      %p138 = por %p136, %p137
      %p139 = scmp.ne.s32.totalorder %s131, %s134
      %p140 = scmp.eq.s32.totalorder %s15, 0
      %p141 = por %p139, %p140
      %p142 = scmp.ne.s32.totalorder %s131, %s134
      %p143 = scmp.eq.s32.totalorder %s20, 3
      %p144 = por %p142, %p143
      %p145 = scmp.ne.s32.totalorder %s134, %s135
      %p146 = scmp.eq.s32.totalorder %s20, 0
      %p147 = por %p145, %p146
      %p148 = scmp.ne.s32.totalorder %s134, %s135
      %p149 = scmp.eq.s32.totalorder %s21, 3
      %p150 = por %p148, %p149
      %p152 = scmp.ne.s32.totalorder %s135, %s151
      %p153 = scmp.eq.s32.totalorder %s21, 0
      %p154 = por %p152, %p153
      %s155 = ssub.s32 %s23, %s30
      %p156 = scmp.eq.s32.totalorder %s155, 0
      %s158 = sadd.s32 %s157, 1
      %s159 = scalar_select %p156, %s157, %s158
      %p162 = pneg %p156
      %p163 = scmp.eq.s32.totalorder %s15, 3
      %p164 = por %p162, %p163
      %p165 = scmp.ne.s32.totalorder %s157, %s160
      %p166 = scmp.eq.s32.totalorder %s15, 0
      %p167 = por %p165, %p166
      %p168 = scmp.ne.s32.totalorder %s157, %s160
      %p169 = scmp.eq.s32.totalorder %s20, 3
      %p170 = por %p168, %p169
      %p171 = scmp.ne.s32.totalorder %s160, %s161
      %p172 = scmp.eq.s32.totalorder %s20, 0
      %p173 = por %p171, %p172
      %p174 = scmp.ne.s32.totalorder %s160, %s161
      %p175 = scmp.eq.s32.totalorder %s21, 3
      %p176 = por %p174, %p175
      %p178 = scmp.ne.s32.totalorder %s161, %s177
      %p179 = scmp.eq.s32.totalorder %s21, 0
      %p180 = por %p178, %p179
      %s181 = ssub.s32 %s23, %s30
      %p182 = scmp.eq.s32.totalorder %s181, 0
      %s184 = sadd.s32 %s183, 1
      %s185 = scalar_select %p182, %s183, %s184
      %p188 = pneg %p182
      %p189 = scmp.eq.s32.totalorder %s15, 3
      %p190 = por %p188, %p189
      %p191 = scmp.ne.s32.totalorder %s183, %s186
      %p192 = scmp.eq.s32.totalorder %s15, 0
      %p193 = por %p191, %p192
      %p194 = scmp.ne.s32.totalorder %s183, %s186
      %p195 = scmp.eq.s32.totalorder %s20, 3
      %p196 = por %p194, %p195
      %p197 = scmp.ne.s32.totalorder %s186, %s187
      %p198 = scmp.eq.s32.totalorder %s20, 0
      %p199 = por %p197, %p198
      %p200 = scmp.ne.s32.totalorder %s186, %s187
      %p201 = scmp.eq.s32.totalorder %s21, 3
      %p202 = por %p200, %p201
      %p204 = scmp.ne.s32.totalorder %s187, %s203
      %p205 = scmp.eq.s32.totalorder %s21, 0
      %p206 = por %p204, %p205
      %s207 = ssub.s32 %s23, %s30
      %p208 = scmp.eq.s32.totalorder %s207, 0
      %s210 = sadd.s32 %s209, 1
      %s211 = scalar_select %p208, %s209, %s210
      %p214 = pneg %p208
      %p215 = scmp.eq.s32.totalorder %s15, 3
      %p216 = por %p214, %p215
      %p217 = scmp.ne.s32.totalorder %s209, %s212
      %p218 = scmp.eq.s32.totalorder %s15, 0
      %p219 = por %p217, %p218
      %p220 = scmp.ne.s32.totalorder %s209, %s212
      %p221 = scmp.eq.s32.totalorder %s20, 3
      %p222 = por %p220, %p221
      %p223 = scmp.ne.s32.totalorder %s212, %s213
      %p224 = scmp.eq.s32.totalorder %s20, 0
      %p225 = por %p223, %p224
      %p226 = scmp.ne.s32.totalorder %s212, %s213
      %p227 = scmp.eq.s32.totalorder %s21, 3
      %p228 = por %p226, %p227
      %p230 = scmp.ne.s32.totalorder %s213, %s229
      %p231 = scmp.eq.s32.totalorder %s21, 0
      %p232 = por %p230, %p231
      %s233 = ssub.s32 %s22, %s34
      %p234 = scmp.eq.s32.totalorder %s233, 0
      %s236 = sadd.s32 %s235, 1
      %s237 = scalar_select %p234, %s235, %s236
      %p240 = pneg %p234
      %p241 = scmp.eq.s32.totalorder %s15, 3
      %p242 = por %p240, %p241
      %p243 = scmp.ne.s32.totalorder %s235, %s238
      %p244 = scmp.eq.s32.totalorder %s15, 0
      %p245 = por %p243, %p244
      %p246 = scmp.ne.s32.totalorder %s235, %s238
      %p247 = scmp.eq.s32.totalorder %s20, 3
      %p248 = por %p246, %p247
      %p249 = scmp.ne.s32.totalorder %s238, %s239
      %p250 = scmp.eq.s32.totalorder %s20, 0
      %p251 = por %p249, %p250
      %p252 = scmp.ne.s32.totalorder %s238, %s239
      %p253 = scmp.eq.s32.totalorder %s21, 3
      %p254 = por %p252, %p253
      %p256 = scmp.ne.s32.totalorder %s239, %s255
      %p257 = scmp.eq.s32.totalorder %s21, 0
      %p258 = por %p256, %p257
      %p259 = scmp.le.s32.totalorder 1, %s15
      %p260 = scmp.lt.s32.totalorder %s15, 5
      %p261 = pnand %p259, %p260
      %p262 = pneg %p261
      // Predicated region
      $region9: #{block_forward.3} parent=5 // pred_check
        _
      $region10: #{block_forward.3} parent=5 // pred_check_branch
        %264 = sbr.rel (%p261) target = $region12
      $region11: #{block_forward.3} parent=5 // pred_region
        %s265 = ssub.s32 %s15, 1
        // Predicated region
        $region13: #{block_forward.3} parent=11 // pred_check
          %p266 = pneg %p53
        $region14: #{block_forward.3} parent=11 // pred_check_branch
          %268 = sbr.rel (%p266) target = $region16
        $region15: #{block_forward.3} parent=11 // pred_region
          %s269 = smul.u32 2, %s24
          %p270 = scmp.lt.s32.totalorder %s269, 1
          %s271 = scalar_select %p270, %s269, 1
          %s272 = smul.addr %s271, 8
          %s273 = scalar_lea.vmem %s0, %s272
          %s274 = smul.u32 2, %s24
        $region16: #{block_forward.3} parent=11 // pred_fallthru
          _
        // Predicated region
        $region17: #{block_forward.3} parent=11 // pred_check
          %p275 = pneg %p79
        $region18: #{block_forward.3} parent=11 // pred_check_branch
          %277 = sbr.rel (%p275) target = $region20
        $region19: #{block_forward.3} parent=11 // pred_region
          %s278 = smul.u32 2, %s24
          %p279 = scmp.lt.s32.totalorder %s278, 1
          %s280 = scalar_select %p279, %s278, 1
          %s281 = smul.addr %s280, 8
          %s282 = scalar_lea.vmem %s1, %s281
          %s283 = smul.u32 2, %s24
        $region20: #{block_forward.3} parent=11 // pred_fallthru
          _
        // Predicated region
        $region21: #{block_forward.3} parent=11 // pred_check
          %p284 = pneg %p100
        $region22: #{block_forward.3} parent=11 // pred_check_branch
          %286 = sbr.rel (%p284) target = $region24
        $region23: #{block_forward.3} parent=11 // pred_region
          _
        $region24: #{block_forward.3} parent=11 // pred_fallthru
          _
        // Predicated region
        $region25: #{block_forward.3} parent=11 // pred_check
          %p287 = pneg %p121
        $region26: #{block_forward.3} parent=11 // pred_check_branch
          %289 = sbr.rel (%p287) target = $region28
        $region27: #{block_forward.3} parent=11 // pred_region
          _
        $region28: #{block_forward.3} parent=11 // pred_fallthru
          _
      $region12: #{block_forward.3} parent=5 // pred_fallthru
        _
      %p290 = scmp.lt.s32.totalorder %s15, 4
      // Predicated region
      $region29: #{block_forward.3} parent=5 // pred_check
        %p291 = pneg %p290
      $region30: #{block_forward.3} parent=5 // pred_check_branch
        %293 = sbr.rel (%p291) target = $region32
      $region31: #{block_forward.3} parent=5 // pred_region
        // Predicated region
        $region33: #{block_forward.3} parent=31 // pred_check
          %p294 = pneg %p141
        $region34: #{block_forward.3} parent=31 // pred_check_branch
          %296 = sbr.rel (%p294) target = $region36
        $region35: #{block_forward.3} parent=31 // pred_region
          %p297 = scmp.lt.s32.totalorder %s23, 3
          %s298 = scalar_select %p297, %s23, 3
          %s299 = smul.addr %s298, 4
          %s300 = smul.addr %s299, 4
          %s301 = scalar_lea.vmem %s4, %s300
        $region36: #{block_forward.3} parent=31 // pred_fallthru
          _
        // Predicated region
        $region37: #{block_forward.3} parent=31 // pred_check
          %p302 = pneg %p167
        $region38: #{block_forward.3} parent=31 // pred_check_branch
          %304 = sbr.rel (%p302) target = $region40
        $region39: #{block_forward.3} parent=31 // pred_region
          %p305 = scmp.lt.s32.totalorder %s23, 3
          %s306 = scalar_select %p305, %s23, 3
          %s307 = scalar_lea.vmem %s5, %s306
        $region40: #{block_forward.3} parent=31 // pred_fallthru
          _
        // Predicated region
        $region41: #{block_forward.3} parent=31 // pred_check
          %p308 = pneg %p193
        $region42: #{block_forward.3} parent=31 // pred_check_branch
          %310 = sbr.rel (%p308) target = $region44
        $region43: #{block_forward.3} parent=31 // pred_region
          %p311 = scmp.lt.s32.totalorder %s23, 3
          %s312 = scalar_select %p311, %s23, 3
          %s313 = smul.addr %s312, 16
          %s314 = smul.addr %s313, 4
          %s315 = scalar_lea.vmem %s6, %s314
        $region44: #{block_forward.3} parent=31 // pred_fallthru
          _
        // Predicated region
        $region45: #{block_forward.3} parent=31 // pred_check
          %p316 = pneg %p219
        $region46: #{block_forward.3} parent=31 // pred_check_branch
          %318 = sbr.rel (%p316) target = $region48
        $region47: #{block_forward.3} parent=31 // pred_region
          %p319 = scmp.lt.s32.totalorder %s23, 3
          %s320 = scalar_select %p319, %s23, 3
          %s321 = scalar_lea.vmem %s7, %s320
        $region48: #{block_forward.3} parent=31 // pred_fallthru
          _
      $region32: #{block_forward.3} parent=5 // pred_fallthru
        _
      %p322 = scmp.le.s32.totalorder 1, %s15
      %p323 = scmp.lt.s32.totalorder %s15, 5
      %p324 = pnand %p322, %p323
      %p325 = pneg %p324
      // Predicated region
      $region49: #{block_forward.3} parent=5 // pred_check
        _
      $region50: #{block_forward.3} parent=5 // pred_check_branch
        %327 = sbr.rel (%p324) target = $region52
      $region51: #{block_forward.3} parent=5 // pred_region
        %s328 = ssub.s32 %s15, 1
        %s329 = smul.u32 2, %s24
        %p330 = scmp.lt.s32.totalorder %s329, 1
        %s331 = scalar_select %p330, %s329, 1
        %s332 = smul.addr %s331, 8
        %s333 = scalar_lea.vmem %s0, %s332
        %p334 = pneg %p53
        %p335 = pneg %p50
        %s336 = smul.u32 2, %s24
        %p337 = scmp.lt.s32.totalorder %s336, 1
        %s338 = scalar_select %p337, %s336, 1
        %s339 = smul.addr %s338, 8
        %s340 = scalar_lea.vmem %s1, %s339
        %p341 = pneg %p79
        %p342 = pneg %p76
        %p343 = pneg %p100
        %p344 = pneg %p97
        %p345 = pneg %p121
        %p346 = pneg %p118
        %p347 = scmp.lt.s32.totalorder %s25, 3
        %s348 = scalar_select %p347, %s25, 3
        %s349 = smul.addr %s348, 4
        %s350 = smul.addr %s349, 4
        %s351 = scalar_lea.vmem %s4, %s350
        %p352 = pneg %p147
        %p353 = pneg %p144
        %p354 = scmp.lt.s32.totalorder %s25, 3
        %s355 = scalar_select %p354, %s25, 3
        %s356 = scalar_lea.vmem %s5, %s355
        %p357 = pneg %p173
        %p358 = pneg %p170
        %p359 = scmp.lt.s32.totalorder %s25, 3
        %s360 = scalar_select %p359, %s25, 3
        %s361 = smul.addr %s360, 16
        %s362 = smul.addr %s361, 4
        %s363 = scalar_lea.vmem %s6, %s362
        %p364 = pneg %p199
        %p365 = pneg %p196
        %p366 = scmp.lt.s32.totalorder %s25, 3
        %s367 = scalar_select %p366, %s25, 3
        %s368 = scalar_lea.vmem %s7, %s367
        %p369 = pneg %p225
        %p370 = pneg %p222
        %p371 = pneg %p251
        %p372 = pneg %p248
        %s373 = smul.u32 2, %s24
        %p374 = scmp.lt.s32.totalorder %s373, 1
        %s375 = scalar_select %p374, %s373, 1
        %s376 = smul.addr %s375, 8
        %s377 = scalar_lea.vmem %s0, %s376
        %s378 = smul.u32 2, %s24
        %s379 = smul.u32 2, %s24
        %p380 = scmp.lt.s32.totalorder %s379, 1
        %s381 = scalar_select %p380, %s379, 1
        %s382 = smul.addr %s381, 8
        %s383 = scalar_lea.vmem %s1, %s382
        %s384 = smul.u32 2, %s24
        %p385 = scmp.lt.s32.totalorder %s25, 3
        %s386 = scalar_select %p385, %s25, 3
        %s387 = smul.addr %s386, 4
        %s388 = smul.addr %s387, 4
        %s389 = scalar_lea.vmem %s4, %s388
        %p390 = scmp.lt.s32.totalorder %s25, 3
        %s391 = scalar_select %p390, %s25, 3
        %s392 = scalar_lea.vmem %s5, %s391
        %p393 = scmp.lt.s32.totalorder %s25, 3
        %s394 = scalar_select %p393, %s25, 3
        %s395 = smul.addr %s394, 16
        %s396 = smul.addr %s395, 4
        %s397 = scalar_lea.vmem %s6, %s396
        %p398 = scmp.lt.s32.totalorder %s25, 3
        %s399 = scalar_select %p398, %s25, 3
        %s400 = scalar_lea.vmem %s7, %s399
        %s401 = smul.u32 2, %s24
        %p403 = scmp.eq.s32.totalorder %s25, 0
        // Predicated region
        $region53: #{block_forward.3} parent=51 // pred_check
          %p404 = pneg %p403
        $region54: #{block_forward.3} parent=51 // pred_check_branch
          %406 = sbr.rel (%p404) target = $region56
        $region55: #{block_forward.3} parent=51 // pred_region
          %v407 = vld [vmem:[%s377] sm:$0xff]
          %v408 = vld [vmem:[%s377 + $0x8] sm:$0xff]
          %v409 = vld [vmem:[%s2] sm:$0x1]
          %v410 = vld [vmem:[%s3] sm:$0x1]
          %vm411 = vcmask 261120
          %v412 = vsel %vm411, %v407, 0.0
          %413 = vadd.xlane.f32.xlu0 %v412
          %v414 = vpop.xlane.xlu0 %413
          %v415 = vsel %vm411, %v408, 0.0
          %416 = vadd.xlane.f32.xlu0 %v415
          %v417 = vpop.xlane.xlu0 %416
          %v418 = vrcp.pop 32.0
          %v419 = vmul.f32 %v414, %v418
          %v420 = vmul.f32 %v417, %v418
          %v421 = vsub.f32 %v407, %v419
          %v422 = vsub.f32 %v408, %v420
          %v423 = vmul.f32 %v421, %v421
          %v424 = vmul.f32 %v422, %v422
          %v425 = vsel %vm411, %v423, 0.0
          %426 = vadd.xlane.f32.xlu0 %v425
          %v427 = vpop.xlane.xlu0 %426
          %v428 = vsel %vm411, %v424, 0.0
          %429 = vadd.xlane.f32.xlu0 %v428
          %v430 = vpop.xlane.xlu0 %429
          %v431 = vmul.f32 %v427, %v418
          %v432 = vmul.f32 %v430, %v418
          %v433 = vadd.f32 %v431, 1e-05
          %v434 = vadd.f32 %v432, 1e-05
          %v435 = vrsqrt.pop %v433
          %v436 = vrsqrt.pop %v434
          %v437 = vmul.f32 %v421, %v435
          %v438 = vmul.f32 %v422, %v436
          %v440 = vlaneseq
          %v441 = vshrl.u32 %v440, 7
          %v442 = vsub.s32 0, %v441
          %v443 = vrot.slane %v409, %v442
          %v445 = vmul.f32 %v437, %v443
          %v446 = vmul.f32 %v438, %v443
          %v448 = vlaneseq
          %v449 = vshrl.u32 %v448, 7
          %v450 = vsub.s32 0, %v449
          %v451 = vrot.slane %v410, %v450
          %v453 = vadd.f32 %v445, %v451
          %v454 = vadd.f32 %v446, %v451
          %v455 = vpack.c.bf16 %v454, %v453
          %456 = vst.msk [vmem:[#allocation2] sm:$0xff] %vm411, %v455
          %457 = vst.msk [vmem:[#allocation3] sm:$0xff] %vm411, 0.0
          %458 = vst.msk [vmem:[#allocation3 + $0x8] sm:$0xff] %vm411, 0.0
        $region56: #{block_forward.3} parent=51 // pred_fallthru
          _
        %v459 = vld [vmem:[#allocation2] sm:$0xff]
        %v460 = vld [vmem:[%s389] sm:$0xf]
        %v461 = vld [vmem:[%s389 + $0x4] sm:$0xf]
        %v462 = vld [vmem:[%s389 + $0x8] sm:$0xf]
        %v463 = vld [vmem:[%s389 + $0xc] sm:$0xf]
        %v464 = vld [vmem:[%s392] sm:$0x1]
        %v466 = vlaneseq
        %v467 = vshrl.u32 %v466, 7
        %v468 = vsub.s32 0, %v467
        %v469 = vrot.slane %v464, %v468
        %v475 = vunpack.c.l.b16 %v460
        %v476 = vunpack.c.l.b16 %v461
        %v477 = vunpack.c.l.b16 %v462
        %v478 = vunpack.c.l.b16 %v463
        %v479 = vpack.c.b16 %v476, %v475
        %v480 = vpack.c.b16 %v478, %v477
        %vm483 = vcmask 261120
        %v485 = vsel %vm483, %v459, 0
        %487 = vmatprep.subr.bf16.mxu0 0
        %488 = vmatpush1.bf16.msra.mxu0 %v479
        %489 = vmatprep.subr.bf16.mxu0 0
        %490 = vmatpush1.bf16.msra.mxu0 %v480
        %491 = vmatprep.subr.bf16.mxu0 0
        %492 = vmatpush1.bf16.msra.mxu0 0
        %493 = vmatprep.subr.bf16.mxu0 0
        %494 = vmatpush1.bf16.msra.mxu0 0
        %495 = vmatprep.subr.bf16.mxu0 0
        %496 = vmatpush1.bf16.msra.mxu0 0
        %497 = vmatprep.subr.bf16.mxu0 0
        %498 = vmatpush1.bf16.msra.mxu0 0
        %499 = vmatprep.subr.bf16.mxu0 0
        %500 = vmatpush1.bf16.msra.mxu0 0
        %501 = vmatprep.subr.bf16.mxu0 0
        %502 = vmatpush1.bf16.msra.mxu0 0
        %503 = vmatprep.subr.bf16.mxu0 0
        %504 = vmatpush1.bf16.msra.mxu0 0
        %505 = vmatprep.subr.bf16.mxu0 0
        %506 = vmatpush1.bf16.msra.mxu0 0
        %507 = vmatprep.subr.bf16.mxu0 0
        %508 = vmatpush1.bf16.msra.mxu0 0
        %509 = vmatprep.subr.bf16.mxu0 0
        %510 = vmatpush1.bf16.msra.mxu0 0
        %511 = vmatprep.subr.bf16.mxu0 0
        %512 = vmatpush1.bf16.msra.mxu0 0
        %513 = vmatprep.subr.bf16.mxu0 0
        %514 = vmatpush1.bf16.msra.mxu0 0
        %515 = vmatprep.subr.bf16.mxu0 0
        %516 = vmatpush1.bf16.msra.mxu0 0
        %517 = vmatprep.subr.bf16.mxu0 0
        %518 = vmatpush1.bf16.msra.mxu0 0
        %519 = vmatprep.mubr.bf16.mxu0 0
        %520 = vmatmul.mubr.bf16.gmra.mrb[0].mxu0 %v485
        %v521 = vpop.f32.mrb[0].mxu0
        %v522 = vadd.f32 %v469, %v521
        %v523 = vpop.f32.mrb[0].mxu0
        %v524 = vpop.f32.mrb[0].mxu0
        %v525 = vadd.f32 %v469, %v524
        %v526 = vpop.f32.mrb[0].mxu0
        %527 = vdwg.mxu0
        %v528 = vmax.f32 %v522, 0.0
        %v529 = vmax.f32 %v525, 0.0
        %v530 = vpack.c.bf16 %v529, %v528
        %v531 = vld [vmem:[%s397] sm:$0xf]
        %v532 = vld [vmem:[%s397 + $0x4] sm:$0xf]
        %v533 = vld [vmem:[%s397 + $0x8] sm:$0xf]
        %v534 = vld [vmem:[%s397 + $0xc] sm:$0xf]
        %v535 = vld [vmem:[%s397 + $0x10] sm:$0xf]
        %v536 = vld [vmem:[%s397 + $0x14] sm:$0xf]
        %v537 = vld [vmem:[%s397 + $0x18] sm:$0xf]
        %v538 = vld [vmem:[%s397 + $0x1c] sm:$0xf]
        %v539 = vld [vmem:[%s397 + $0x20] sm:$0xf]
        %v540 = vld [vmem:[%s397 + $0x24] sm:$0xf]
        %v541 = vld [vmem:[%s397 + $0x28] sm:$0xf]
        %v542 = vld [vmem:[%s397 + $0x2c] sm:$0xf]
        %v543 = vld [vmem:[%s397 + $0x30] sm:$0xf]
        %v544 = vld [vmem:[%s397 + $0x34] sm:$0xf]
        %v545 = vld [vmem:[%s397 + $0x38] sm:$0xf]
        %v546 = vld [vmem:[%s397 + $0x3c] sm:$0xf]
        %v547 = vld [vmem:[%s400] sm:$0x1]
        %v549 = vlaneseq
        %v550 = vshrl.u32 %v549, 7
        %v551 = vsub.s32 0, %v550
        %v552 = vrot.slane %v547, %v551
        %v570 = vunpack.c.l.b16 %v531
        %v571 = vunpack.c.l.b16 %v532
        %v572 = vunpack.c.l.b16 %v533
        %v573 = vunpack.c.l.b16 %v534
        %v574 = vunpack.c.l.b16 %v535
        %v575 = vunpack.c.l.b16 %v536
        %v576 = vunpack.c.l.b16 %v537
        %v577 = vunpack.c.l.b16 %v538
        %v578 = vunpack.c.l.b16 %v539
        %v579 = vunpack.c.l.b16 %v540
        %v580 = vunpack.c.l.b16 %v541
        %v581 = vunpack.c.l.b16 %v542
        %v582 = vunpack.c.l.b16 %v543
        %v583 = vunpack.c.l.b16 %v544
        %v584 = vunpack.c.l.b16 %v545
        %v585 = vunpack.c.l.b16 %v546
        %v586 = vpack.c.b16 %v571, %v570
        %v587 = vpack.c.b16 %v573, %v572
        %v588 = vpack.c.b16 %v575, %v574
        %v589 = vpack.c.b16 %v577, %v576
        %v590 = vpack.c.b16 %v579, %v578
        %v591 = vpack.c.b16 %v581, %v580
        %v592 = vpack.c.b16 %v583, %v582
        %v593 = vpack.c.b16 %v585, %v584
        %602 = vmatprep.subr.bf16.mxu0 0
        %603 = vmatpush1.bf16.msra.mxu0 %v586
        %604 = vmatprep.subr.bf16.mxu0 0
        %605 = vmatpush1.bf16.msra.mxu0 %v587
        %606 = vmatprep.subr.bf16.mxu0 0
        %607 = vmatpush1.bf16.msra.mxu0 %v588
        %608 = vmatprep.subr.bf16.mxu0 0
        %609 = vmatpush1.bf16.msra.mxu0 %v589
        %610 = vmatprep.subr.bf16.mxu0 0
        %611 = vmatpush1.bf16.msra.mxu0 %v590
        %612 = vmatprep.subr.bf16.mxu0 0
        %613 = vmatpush1.bf16.msra.mxu0 %v591
        %614 = vmatprep.subr.bf16.mxu0 0
        %615 = vmatpush1.bf16.msra.mxu0 %v592
        %616 = vmatprep.subr.bf16.mxu0 0
        %617 = vmatpush1.bf16.msra.mxu0 %v593
        %618 = vmatprep.subr.bf16.mxu0 0
        %619 = vmatpush1.bf16.msra.mxu0 0
        %620 = vmatprep.subr.bf16.mxu0 0
        %621 = vmatpush1.bf16.msra.mxu0 0
        %622 = vmatprep.subr.bf16.mxu0 0
        %623 = vmatpush1.bf16.msra.mxu0 0
        %624 = vmatprep.subr.bf16.mxu0 0
        %625 = vmatpush1.bf16.msra.mxu0 0
        %626 = vmatprep.subr.bf16.mxu0 0
        %627 = vmatpush1.bf16.msra.mxu0 0
        %628 = vmatprep.subr.bf16.mxu0 0
        %629 = vmatpush1.bf16.msra.mxu0 0
        %630 = vmatprep.subr.bf16.mxu0 0
        %631 = vmatpush1.bf16.msra.mxu0 0
        %632 = vmatprep.subr.bf16.mxu0 0
        %633 = vmatpush1.bf16.msra.mxu0 0
        %634 = vmatprep.mubr.bf16.mxu0 0
        %635 = vmatmul.mubr.bf16.gmra.mrb[0].mxu0 %v530
        %v636 = vpop.f32.mrb[0].mxu0
        %v637 = vadd.f32 %v552, %v636
        %v638 = vpop.f32.mrb[0].mxu0
        %v639 = vpop.f32.mrb[0].mxu0
        %v640 = vadd.f32 %v552, %v639
        %v641 = vpop.f32.mrb[0].mxu0
        %642 = vdwg.mxu0
        %v643 = vld [vmem:[%s383] sm:$0xff]
        %v644 = vld [vmem:[%s383 + $0x8] sm:$0xff]
        %v645 = vlaneseq
        %v646 = vand.u32 %v645, 127
        %v647 = vstv %s25
        %vm648 = vcmp.eq.s32.totalorder %v646, %v647
        %v649 = vsel %vm648, %v643, 0.0
        %v650 = vsel %vm648, %v644, 0.0
        %vm651 = vcmask 31744
        %v652 = vsel %vm651, %v649, 0.0
        %653 = vadd.xlane.f32.xlu0 %v652
        %v654 = vpop.xlane.xlu0 %653
        %v655 = vsel %vm651, %v650, 0.0
        %656 = vadd.xlane.f32.xlu0 %v655
        %v657 = vpop.xlane.xlu0 %656
        %v658 = vld [vmem:[#allocation3] sm:$0xff]
        %v659 = vld [vmem:[#allocation3 + $0x8] sm:$0xff]
        %v660 = vmul.f32 %v654, %v637
        %v661 = vmul.f32 %v657, %v640
        %v662 = vadd.f32 %v658, %v660
        %v663 = vadd.f32 %v659, %v661
        %664 = vst.msk [vmem:[#allocation3] sm:$0xff] %vm483, %v662
        %665 = vst.msk [vmem:[#allocation3 + $0x8] sm:$0xff] %vm483, %v663
        %p666 = scmp.eq.s32.totalorder %s25, 3
        // Predicated region
        $region57: #{block_forward.3} parent=51 // pred_check
          %p667 = pneg %p666
        $region58: #{block_forward.3} parent=51 // pred_check_branch
          %669 = sbr.rel (%p667) target = $region60
        $region59: #{block_forward.3} parent=51 // pred_region
          %v670 = vld [vmem:[%s377] sm:$0xff]
          %v671 = vld [vmem:[%s377 + $0x8] sm:$0xff]
          %v672 = vld [vmem:[#allocation3] sm:$0xff]
          %v673 = vld [vmem:[#allocation3 + $0x8] sm:$0xff]
          %v674 = vadd.f32 %v670, %v672
          %v675 = vadd.f32 %v671, %v673
          %676 = vst.msk [vmem:[#allocation4] sm:$0xff] %vm483, %v674
          %677 = vst.msk [vmem:[#allocation4 + $0x8] sm:$0xff] %vm483, %v675
        $region60: #{block_forward.3} parent=51 // pred_fallthru
          _
        // Predicated region
        $region61: #{block_forward.3} parent=51 // pred_check
          %p678 = pneg %p248
        $region62: #{block_forward.3} parent=51 // pred_check_branch
          %680 = sbr.rel (%p678) target = $region64
        $region63: #{block_forward.3} parent=51 // pred_region
          %s681 = smul.u32 2, %s24
          %s683 = ssub.s32 256, 256
          %684 = vsyncadd [#allocation5], %s683
          %s685 = smul.addr %s681, 128
          %s686 = scalar_lea.hbm %s8, %s685
          %s687 = sshll.u32 [#allocation4], 4
          %s688 = int_to_ptr.vmem [resolvable:$true] %s687
          %693 = dma.vmem_to_hbm [thread:$0]  %s688, 256, %s686, [#allocation5], 128, 128, 8
        $region64: #{block_forward.3} parent=51 // pred_fallthru
          _
        // Predicated region
        $region65: #{block_forward.3} parent=51 // pred_check
          %p694 = pneg %p248
        $region66: #{block_forward.3} parent=51 // pred_check_branch
          %696 = sbr.rel (%p694) target = $region68
        $region67: #{block_forward.3} parent=51 // pred_region
          %697 = dma.done [#allocation5], 256
        $region68: #{block_forward.3} parent=51 // pred_fallthru
          _
      $region52: #{block_forward.3} parent=5 // pred_fallthru
        _
      %p698 = scmp.le.s32.totalorder 2, %s15
      // Predicated region
      $region69: #{block_forward.3} parent=5 // pred_check
        %p699 = pneg %p698
      $region70: #{block_forward.3} parent=5 // pred_check_branch
        %701 = sbr.rel (%p699) target = $region72
      $region71: #{block_forward.3} parent=5 // pred_region
        %s702 = ssub.s32 %s15, 2
      $region72: #{block_forward.3} parent=5 // pred_fallthru
        _
    $region6: #{block_forward.3} parent=1 // loop_footer
      %s19 = sadd.s32 1, %s15
    $region7: #{block_forward.3} parent=1 // loop_footer_branch
      %14 = sbr.rel target = $region3
    $region8: #{block_forward.3} parent=1 // loop_exit
      _
    %703 = vsyncpa [#allocation5], 1
    %s704 = scalar_lea.sflag [#allocation5], 1
    %705 = vsyncpa %s704, 1

</llo_original>
